<compile_context>
chip_gen: v5e
topology: v5e:2x2
jax: 0.10.0
libtpu: 0.0.40
codegen_flags: <defaults>
</compile_context>

<pallas_src>
import functools
import math

import jax
import jax.numpy as jnp
import numpy as np
from jax.experimental import pallas as pl
from jax.experimental.pallas import tpu as pltpu

# Finite "-inf": exp(_MASK_NEG - m) underflows to exactly 0 for any realistic m,
# so masked columns contribute exactly nothing, while the online-softmax rescale
# factor exp(m_prev - m_new) stays finite (no NaN poisoning of partially masked
# tiles).  The truly fully-masked row (global row T-1) gets NaN injected
# explicitly to match torch SDPA semantics.
_MASK_NEG = -1e30
# Above the 16/32 MiB scoped defaults, below physical VMEM on every generation
# (v5e/v6e: 128 MiB, v7x: 64 MiB).
_VMEM_LIMIT = 56 * 1024 * 1024


def _pick_tile(n, cap=256):
    for cand in (512, 256, 128, 64, 32, 16, 8):
        if cand <= cap and n % cand == 0:
            return cand
    return n


# --------------------------------------------------------------------------
# Stage 1: lane-dense QKV projection.  x (Tp, d_in) @ w (d_in, 3*d_out) with
# bf16 MXU operands / f32 accumulation; 1/sqrt(head_dim) is pre-folded into
# the query columns of w by the wrapper.
# --------------------------------------------------------------------------
def _qkv_proj_kernel(x_ref, w_ref, o_ref):
    x = x_ref[...].astype(jnp.bfloat16)       # cast in-kernel: x stays f32 in HBM
    o_ref[...] = jnp.dot(x, w_ref[...],
                         preferred_element_type=jnp.float32).astype(o_ref.dtype)


def _qkv_proj(x, w_qkv_bf16, Tp):
    B, T, d_in = x.shape
    d3 = w_qkv_bf16.shape[1]
    return pl.pallas_call(
        _qkv_proj_kernel,
        out_shape=jax.ShapeDtypeStruct((B, T, d3), jnp.bfloat16),
        grid_spec=pltpu.PrefetchScalarGridSpec(
            num_scalar_prefetch=0,
            grid=(B, T // Tp),
            in_specs=[
                pl.BlockSpec((None, Tp, d_in), lambda b, t: (b, t, 0)),
                pl.BlockSpec((d_in, d3), lambda b, t: (0, 0)),
            ],
            out_specs=pl.BlockSpec((None, Tp, d3), lambda b, t: (b, t, 0)),
        ),
        compiler_params=pltpu.CompilerParams(
            dimension_semantics=("parallel", "parallel"),
            vmem_limit_bytes=_VMEM_LIMIT),
    )(x, w_qkv_bf16)


# --------------------------------------------------------------------------
# Stage 2: fused masked attention + per-head output projection.
# Grid = (B, T//Tq, H); heads innermost, accumulating ctx_h @ W_o[h] straight
# into the (Tq, d_out) output block (initialized with the bias at h == 0).
# --------------------------------------------------------------------------
def _attn_kernel(q_ref, k_ref, v_ref, wo_ref, b_ref, o_ref):
    _, _, Tq, hd = q_ref.shape               # q block: (1, 1, Tq, hd) bf16
    T = k_ref.shape[2]                       # k/v block: (1, 1, T, hd) bf16
    Tk = Tq
    n_kv = T // Tk
    d_out = o_ref.shape[-1]                  # o block: (Tq, d_out) f32

    qi = pl.program_id(1)
    h = pl.program_id(2)
    row0 = qi * Tq
    neg = jnp.float32(_MASK_NEG)

    # h == 0: initialize the output block with the projection bias and inject
    # NaN on the globally fully-masked row (only global row T-1 with the
    # strictly-upper "attend to the future" mask).  NaN survives the later
    # per-head accumulations, matching torch's SDPA math backend.
    @pl.when(h == 0)
    def _():
        rows_o = row0 + jax.lax.broadcasted_iota(jnp.int32, (Tq, d_out), 0)
        bias = jnp.broadcast_to(b_ref[...].astype(jnp.float32), (Tq, d_out))
        o_ref[...] = jnp.where(rows_o == T - 1, jnp.float32(float("nan")), bias)

    q = q_ref[0, 0]                                                   # (Tq, hd) bf16
    rows = row0 + jax.lax.broadcasted_iota(jnp.int32, (Tq, Tk), 0)

    def kv_step(kv, carry):
        m_prev, l_prev, acc_prev = carry
        col0 = pl.multiple_of(kv * Tk, Tk)
        k_t = k_ref[0, 0, pl.ds(col0, Tk), :]                         # (Tk, hd) bf16
        v_t = v_ref[0, 0, pl.ds(col0, Tk), :]
        # QK^T without transposing K: contract head_dim axes on the MXU.
        s = jax.lax.dot_general(q, k_t, (((1,), (1,)), ((), ())),
                                preferred_element_type=jnp.float32)   # (Tq, Tk) f32
        cols = col0 + jax.lax.broadcasted_iota(jnp.int32, (Tq, Tk), 1)
        s = jnp.where(cols > rows, s, neg)        # SDPA bool mask: True = attend
        m_cur = jnp.max(s, axis=-1, keepdims=True)
        m_new = jnp.maximum(m_prev, m_cur)
        alpha = jnp.exp(m_prev - m_new)           # finite; ==0 when wiping masked-only garbage
        p = jnp.exp(s - m_new)                    # softmax math kept in f32 (v5e EUP)
        l_new = alpha * l_prev + jnp.sum(p, axis=-1, keepdims=True)
        acc_new = alpha * acc_prev + jnp.dot(
            p.astype(jnp.bfloat16), v_t, preferred_element_type=jnp.float32)
        return m_new, l_new, acc_new

    carry0 = (jnp.full((Tq, 1), neg, jnp.float32),
              jnp.zeros((Tq, 1), jnp.float32),
              jnp.zeros((Tq, hd), jnp.float32))
    # Mask-structure skip: key tiles whose columns are all <= row0 are fully
    # masked for every row of this query tile; with Tk == Tq that is kv < qi.
    _, l, acc = jax.lax.fori_loop(qi, n_kv, kv_step, carry0)

    ctx = (acc * (1.0 / l)).astype(jnp.bfloat16)                      # (Tq, hd)
    # Fused per-head output projection accumulated directly into the output.
    o_ref[...] += jnp.dot(ctx, wo_ref[h], preferred_element_type=jnp.float32)


def _attention(q, k, v, w_o_h, b2, Tq, out_dtype):
    B, H, T, hd = q.shape
    d_out = w_o_h.shape[-1]
    return pl.pallas_call(
        _attn_kernel,
        out_shape=jax.ShapeDtypeStruct((B, T, d_out), out_dtype),
        grid_spec=pltpu.PrefetchScalarGridSpec(
            num_scalar_prefetch=0,
            grid=(B, T // Tq, H),
            in_specs=[
                pl.BlockSpec((1, 1, Tq, hd), lambda b, qi, h: (b, h, qi, 0)),  # q tile
                pl.BlockSpec((1, 1, T, hd), lambda b, qi, h: (b, h, 0, 0)),    # K (full T)
                pl.BlockSpec((1, 1, T, hd), lambda b, qi, h: (b, h, 0, 0)),    # V (full T)
                pl.BlockSpec((H, hd, d_out), lambda b, qi, h: (0, 0, 0)),      # W_o (all heads, resident)
                pl.BlockSpec((1, d_out), lambda b, qi, h: (0, 0)),             # bias
            ],
            out_specs=pl.BlockSpec((None, Tq, d_out), lambda b, qi, h: (b, qi, 0)),
        ),
        compiler_params=pltpu.CompilerParams(
            # batch & query-tile axes are independent -> megacore-parallel;
            # the head axis accumulates into the output block -> arbitrary, innermost.
            dimension_semantics=("parallel", "parallel", "arbitrary"),
            vmem_limit_bytes=_VMEM_LIMIT),
    )(q, k, v, w_o_h, b2)


# --------------------------------------------------------------------------
# Wrapper (jit = trace/compile cache; no device sync in the library path).
# --------------------------------------------------------------------------
@functools.partial(jax.jit, static_argnames=("num_heads", "q_tile"))
def mha_sdpa_without_flash(x, w_qkv, w_proj, b_proj, *, num_heads, q_tile=None):
    """x: (B, T, d_in); w_qkv: (d_in, 3*d_out) (pre-transposed torch weight);
    w_proj: (d_out, d_out) (pre-transposed); b_proj: (d_out,) or (1, d_out)."""
    B, T, d_in = x.shape
    d_out = w_proj.shape[1]
    assert d_out % num_heads == 0
    hd = d_out // num_heads
    Tq = q_tile if q_tile is not None else _pick_tile(T, cap=256)
    assert T % Tq == 0
    Tp = _pick_tile(T, cap=256)

    # Fold SDPA's 1/sqrt(head_dim) into the query weights (in f32), then cast
    # the weights once to bf16 (MXU operands; f32 accumulation in the kernels).
    scale = 1.0 / math.sqrt(hd)
    w_qkv_s = jnp.concatenate([w_qkv[:, :d_out] * scale, w_qkv[:, d_out:]],
                              axis=1).astype(jnp.bfloat16)

    # Stage 1: lane-dense QKV projection (hoisted out of the attention kernel).
    qkv = _qkv_proj(x, w_qkv_s, Tp)                          # (B, T, 3*d_out) bf16

    # Wrapper-side layout plumbing: split into head-major q/k/v (B, H, T, hd).
    qkv = qkv.reshape(B, T, 3, num_heads, hd)
    q = jnp.transpose(qkv[:, :, 0], (0, 2, 1, 3))
    k = jnp.transpose(qkv[:, :, 1], (0, 2, 1, 3))
    v = jnp.transpose(qkv[:, :, 2], (0, 2, 1, 3))

    w_o_h = w_proj.reshape(num_heads, hd, d_out).astype(jnp.bfloat16)
    b2 = jnp.reshape(b_proj, (1, d_out)).astype(jnp.float32)

    # Stage 2: fused masked attention + per-head output projection.
    # TODO(synk): dropout (module default p=0.0 / eval mode) is a no-op and is not implemented.
    return _attention(q, k, v, w_o_h, b2, Tq, x.dtype)


def mha_ref(x, w_qkv, w_proj, b_proj, *, num_heads):
    """Plain-JAX f32 reference mirroring the PyTorch forward (for validation)."""
    hp = jax.lax.Precision.HIGHEST
    B, T, d_in = x.shape
    d_out = w_proj.shape[1]
    hd = d_out // num_heads
    qkv = jnp.einsum("btd,df->btf", x, w_qkv, precision=hp)
    qkv = qkv.reshape(B, T, 3, num_heads, hd).transpose(2, 0, 3, 1, 4)
    q, k, v = qkv[0], qkv[1], qkv[2]                                  # (B, H, T, hd)
    s = jnp.einsum("bhtd,bhsd->bhts", q, k, precision=hp) / math.sqrt(hd)
    keep = jnp.triu(jnp.ones((T, T), bool), k=1)                      # SDPA: True = attend
    s = jnp.where(keep, s, -jnp.inf)
    m = jnp.max(s, axis=-1, keepdims=True)
    e = jnp.exp(s - m)
    p = e / jnp.sum(e, axis=-1, keepdims=True)                        # NaN on fully-masked row
    ctx = jnp.einsum("bhts,bhsd->bhtd", p, v, precision=hp)
    ctx = ctx.transpose(0, 2, 1, 3).reshape(B, T, d_out)
    return jnp.einsum("btd,de->bte", ctx, w_proj, precision=hp) + b_proj


if __name__ == "__main__":
    # Small but tile-realistic shapes: multiple query tiles (exercises the
    # mask-skip / online softmax across tiles), real (8,128) tiling and
    # lane-padded head_dim -- addresses the review concern that the tiny
    # original test never exercised these paths.
    B, T = 2, 256
    d_in, d_out, num_heads, context_length = 64, 64, 4, 256
    assert context_length >= T     # module then uses mask[:T, :T]

    key = jax.random.PRNGKey(0)
    kx, kqkv, kproj, kb = jax.random.split(key, 4)

    x = jax.random.normal(kx, (B, T, d_in), jnp.float32)
    lim_qkv = 1.0 / math.sqrt(d_in)
    w_qkv = jax.random.uniform(kqkv, (d_in, 3 * d_out), jnp.float32, -lim_qkv, lim_qkv)
    lim_p = 1.0 / math.sqrt(d_out)
    w_proj = jax.random.uniform(kproj, (d_out, d_out), jnp.float32, -lim_p, lim_p)
    b_proj = jax.random.uniform(kb, (1, d_out), jnp.float32, -lim_p, lim_p)

    out = mha_sdpa_without_flash(x, w_qkv, w_proj, b_proj,
                                 num_heads=num_heads, q_tile=128)
    out = jax.block_until_ready(out)

    ref = mha_ref(x, w_qkv, w_proj, b_proj, num_heads=num_heads)
    out_np, ref_np = np.asarray(out), np.asarray(ref)

    # Fully-masked last query row (SDPA bool-mask: True = attend, strictly upper
    # triangular) must be NaN in both kernel and reference.
    assert np.isnan(ref_np[:, -1, :]).all()
    assert np.isnan(out_np[:, -1, :]).all()
    # bf16 MXU operands (f32 accumulation/softmax) -> relaxed tolerance vs f32.
    np.testing.assert_allclose(out_np[:, :-1, :], ref_np[:, :-1, :],
                               rtol=2e-2, atol=2e-2)
    print("KERNEL_OK")
</pallas_src>

<mosaic_0001>
module attributes {stable_mosaic.version = 11 : i64} {
  func.func @_qkv_proj_kernel(%arg0: i32, %arg1: i32, %arg2: memref<1x256x64xf32, #tpu.memory_space<vmem>>, %arg3: memref<64x192xbf16, #tpu.memory_space<vmem>>, %arg4: memref<1x256x192xbf16, #tpu.memory_space<vmem>>) attributes {dimension_semantics = [#tpu.dimension_semantics<parallel>, #tpu.dimension_semantics<parallel>], iteration_bounds = array<i64: 2, 1>, scalar_prefetch = 0 : i64, scratch_operands = 0 : i64, tpu.core_type = #tpu.core_type<tc>, window_params = [{transform_indices = @transform_0, window_bounds = array<i64: 1, 256, 64>}, {pipeline_mode = #tpu.pipeline_mode<synchronous>, transform_indices = @transform_1, window_bounds = array<i64: 64, 192>}, {transform_indices = @transform_2, window_bounds = array<i64: 1, 256, 192>}]} {
    %c0 = arith.constant 0 : index
    %c0_0 = arith.constant 0 : index
    %c0_1 = arith.constant 0 : index
    %0 = vector.load %arg2[%c0, %c0_0, %c0_1] : memref<1x256x64xf32, #tpu.memory_space<vmem>>, vector<1x256x64xf32>
    %1 = vector.shape_cast %0 : vector<1x256x64xf32> to vector<256x64xf32>
    %2 = arith.truncf %1 : vector<256x64xf32> to vector<256x64xbf16>
    %c0_2 = arith.constant 0 : index
    %c0_3 = arith.constant 0 : index
    %3 = vector.load %arg3[%c0_2, %c0_3] : memref<64x192xbf16, #tpu.memory_space<vmem>>, vector<64x192xbf16>
    %cst = arith.constant dense<0.000000e+00> : vector<256x192xf32>
    %4 = tpu.matmul %2, %3, %cst {dimension_numbers = #tpu.dot_dimension_numbers<[1], [0], [0], [1], [0, 0, 1, 1], [], []>} : vector<256x64xbf16>, vector<64x192xbf16>, vector<256x192xf32> -> vector<256x192xf32>
    %5 = arith.truncf %4 : vector<256x192xf32> to vector<256x192xbf16>
    %c0_4 = arith.constant 0 : index
    %c0_5 = arith.constant 0 : index
    %c0_6 = arith.constant 0 : index
    %6 = vector.load %arg4[%c0_4, %c0_5, %c0_6] : memref<1x256x192xbf16, #tpu.memory_space<vmem>>, vector<1x256x192xbf16>
    %7 = vector.shape_cast %6 : vector<1x256x192xbf16> to vector<256x192xbf16>
    %8 = vector.shape_cast %5 : vector<256x192xbf16> to vector<1x256x192xbf16>
    tpu.vector_store %arg4[%c0_4, %c0_5, %c0_6], %8 {strides = array<i32>} : memref<1x256x192xbf16, #tpu.memory_space<vmem>>, vector<1x256x192xbf16>,
    return
  }
  func.func @transform_0(%arg0: i32, %arg1: i32) -> (i32, i32, i32) {
    %c0_i32 = arith.constant 0 : i32
    %c0_i32_0 = arith.constant 0 : i32
    return %arg0, %arg1, %c0_i32 : i32, i32, i32
  }
  func.func @transform_1(%arg0: i32, %arg1: i32) -> (i32, i32) {
    %c0_i32 = arith.constant 0 : i32
    %c0_i32_0 = arith.constant 0 : i32
    %c0_i32_1 = arith.constant 0 : i32
    return %c0_i32, %c0_i32_0 : i32, i32
  }
  func.func @transform_2(%arg0: i32, %arg1: i32) -> (i32, i32, i32) {
    %c0_i32 = arith.constant 0 : i32
    %c0_i32_0 = arith.constant 0 : i32
    return %arg0, %arg1, %c0_i32 : i32, i32, i32
  }
}

module attributes {stable_mosaic.version = 11 : i64} {
  func.func @_attn_kernel(%arg0: i32, %arg1: i32, %arg2: i32, %arg3: memref<1x1x128x16xbf16, #tpu.memory_space<vmem>>, %arg4: memref<1x1x256x16xbf16, #tpu.memory_space<vmem>>, %arg5: memref<1x1x256x16xbf16, #tpu.memory_space<vmem>>, %arg6: memref<4x16x64xbf16, #tpu.memory_space<vmem>>, %arg7: memref<1x64xf32, #tpu.memory_space<vmem>>, %arg8: memref<1x128x64xf32, #tpu.memory_space<vmem>>) attributes {dimension_semantics = [#tpu.dimension_semantics<parallel>, #tpu.dimension_semantics<parallel>, #tpu.dimension_semantics<arbitrary>], iteration_bounds = array<i64: 2, 2, 4>, scalar_prefetch = 0 : i64, scratch_operands = 0 : i64, tpu.core_type = #tpu.core_type<tc>, window_params = [{transform_indices = @transform_0, window_bounds = array<i64: 1, 1, 128, 16>}, {transform_indices = @transform_1, window_bounds = array<i64: 1, 1, 256, 16>}, {transform_indices = @transform_2, window_bounds = array<i64: 1, 1, 256, 16>}, {pipeline_mode = #tpu.pipeline_mode<synchronous>, transform_indices = @transform_3, window_bounds = array<i64: 4, 16, 64>}, {pipeline_mode = #tpu.pipeline_mode<synchronous>, transform_indices = @transform_4, window_bounds = array<i64: 1, 64>}, {transform_indices = @transform_5, window_bounds = array<i64: 1, 128, 64>}]} {
    %c128_i32 = arith.constant 128 : i32
    %0 = arith.muli %arg1, %c128_i32 : i32
    %c0_i32 = arith.constant 0 : i32
    %1 = arith.cmpi eq, %arg2, %c0_i32 : i32
    %2 = arith.extui %1 : i1 to i32
    %c0_i32_0 = arith.constant 0 : i32
    %3 = arith.cmpi ne, %2, %c0_i32_0 : i32
    scf.if %3 {
      %30 = tpu.iota {dimensions = array<i32: 0>} : vector<128x64xi32>
      %31 = vector.broadcast %0 : i32 to vector<128x64xi32>
      %32 = arith.addi %31, %30 : vector<128x64xi32>
      %c0_17 = arith.constant 0 : index
      %c0_18 = arith.constant 0 : index
      %33 = vector.load %arg7[%c0_17, %c0_18] : memref<1x64xf32, #tpu.memory_space<vmem>>, vector<1x64xf32>
      %34 = vector.shape_cast %33 : vector<1x64xf32> to vector<1x64xf32>
      %35 = vector.broadcast %34 : vector<1x64xf32> to vector<128x64xf32>
      %c255_i32 = arith.constant 255 : i32
      %36 = vector.broadcast %c255_i32 : i32 to vector<128x64xi32>
      %37 = arith.cmpi eq, %32, %36 : vector<128x64xi32>
      %cst_19 = arith.constant 0x7FC00000 : f32
      %38 = vector.broadcast %cst_19 : f32 to vector<128x64xf32>
      %39 = arith.select %37, %38, %35 : vector<128x64xi1>, vector<128x64xf32>
      %c0_20 = arith.constant 0 : index
      %c0_21 = arith.constant 0 : index
      %c0_22 = arith.constant 0 : index
      %40 = vector.load %arg8[%c0_20, %c0_21, %c0_22] : memref<1x128x64xf32, #tpu.memory_space<vmem>>, vector<1x128x64xf32>
      %41 = vector.shape_cast %40 : vector<1x128x64xf32> to vector<128x64xf32>
      %42 = vector.shape_cast %39 : vector<128x64xf32> to vector<1x128x64xf32>
      tpu.vector_store %arg8[%c0_20, %c0_21, %c0_22], %42 {strides = array<i32>} : memref<1x128x64xf32, #tpu.memory_space<vmem>>, vector<1x128x64xf32>,
    } else {
    }
    %c0 = arith.constant 0 : index
    %c0_1 = arith.constant 0 : index
    %c0_2 = arith.constant 0 : index
    %c0_3 = arith.constant 0 : index
    %4 = vector.load %arg3[%c0, %c0_1, %c0_2, %c0_3] : memref<1x1x128x16xbf16, #tpu.memory_space<vmem>>, vector<1x1x128x16xbf16>
    %5 = vector.shape_cast %4 : vector<1x1x128x16xbf16> to vector<128x16xbf16>
    %6 = tpu.iota {dimensions = array<i32: 0>} : vector<128x128xi32>
    %7 = vector.broadcast %0 : i32 to vector<128x128xi32>
    %8 = arith.addi %7, %6 : vector<128x128xi32>
    %cst = arith.constant -1.000000e+30 : f32
    %9 = vector.broadcast %cst : f32 to vector<128x1xf32>
    %cst_4 = arith.constant 0.000000e+00 : f32
    %10 = vector.broadcast %cst_4 : f32 to vector<128x1xf32>
    %cst_5 = arith.constant 0.000000e+00 : f32
    %11 = vector.broadcast %cst_5 : f32 to vector<128x16xf32>
    %cst_6 = arith.constant -1.000000e+30 : f32
    %c2_i32 = arith.constant 2 : i32
    %12 = arith.subi %c2_i32, %arg1 : i32
    %13 = arith.addi %arg1, %12 : i32
    %c1_i32 = arith.constant 1 : i32
    %14:3 = scf.for %arg9 = %arg1 to %13 step %c1_i32 iter_args(%arg10 = %9, %arg11 = %10, %arg12 = %11) -> (vector<128x1xf32>, vector<128x1xf32>, vector<128x16xf32>)  : i32 {
      %c128_i32_17 = arith.constant 128 : i32
      %30 = arith.muli %arg9, %c128_i32_17 : i32
      %31 = tpu.assume_multiple %30, 128 : i32
      %c0_18 = arith.constant 0 : index
      %c0_19 = arith.constant 0 : index
      %32 = arith.index_cast %31 : i32 to index
      %c0_20 = arith.constant 0 : index
      %33 = vector.load %arg4[%c0_18, %c0_19, %32, %c0_20] : memref<1x1x256x16xbf16, #tpu.memory_space<vmem>>, vector<1x1x128x16xbf16>
      %34 = vector.shape_cast %33 : vector<1x1x128x16xbf16> to vector<128x16xbf16>
      %c0_21 = arith.constant 0 : index
      %c0_22 = arith.constant 0 : index
      %35 = arith.index_cast %31 : i32 to index
      %c0_23 = arith.constant 0 : index
      %36 = vector.load %arg5[%c0_21, %c0_22, %35, %c0_23] : memref<1x1x256x16xbf16, #tpu.memory_space<vmem>>, vector<1x1x128x16xbf16>
      %37 = vector.shape_cast %36 : vector<1x1x128x16xbf16> to vector<128x16xbf16>
      %cst_24 = arith.constant dense<0.000000e+00> : vector<128x128xf32>
      %38 = tpu.matmul %5, %34, %cst_24 {dimension_numbers = #tpu.dot_dimension_numbers<[1], [1], [0], [0], [0, 0, 1, 0], [], []>} : vector<128x16xbf16>, vector<128x16xbf16>, vector<128x128xf32> -> vector<128x128xf32>
      %39 = tpu.iota {dimensions = array<i32: 1>} : vector<128x128xi32>
      %40 = vector.broadcast %31 : i32 to vector<128x128xi32>
      %41 = arith.addi %40, %39 : vector<128x128xi32>
      %42 = arith.cmpi sgt, %41, %8 : vector<128x128xi32>
      %43 = vector.broadcast %cst_6 : f32 to vector<128x128xf32>
      %44 = arith.select %42, %38, %43 : vector<128x128xi1>, vector<128x128xf32>
      %cst_25 = arith.constant dense<0xFF800000> : vector<128xf32>
      %45 = vector.multi_reduction <maximumf>, %44, %cst_25 [1] : vector<128x128xf32> to vector<128xf32>
      %46 = vector.shape_cast %45 : vector<128xf32> to vector<128x1xf32>
      %47 = arith.maximumf %arg10, %46 : vector<128x1xf32>
      %48 = arith.subf %arg10, %47 : vector<128x1xf32>
      %49 = math.exp %48 : vector<128x1xf32>
      %50 = vector.broadcast %47 : vector<128x1xf32> to vector<128x128xf32>
      %51 = arith.subf %44, %50 : vector<128x128xf32>
      %52 = math.exp %51 : vector<128x128xf32>
      %53 = arith.mulf %49, %arg11 : vector<128x1xf32>
      %cst_26 = arith.constant dense<0.000000e+00> : vector<128xf32>
      %54 = vector.multi_reduction <add>, %52, %cst_26 [1] : vector<128x128xf32> to vector<128xf32>
      %55 = vector.shape_cast %54 : vector<128xf32> to vector<128x1xf32>
      %56 = arith.addf %53, %55 : vector<128x1xf32>
      %57 = vector.broadcast %49 : vector<128x1xf32> to vector<128x16xf32>
      %58 = arith.mulf %57, %arg12 : vector<128x16xf32>
      %59 = arith.truncf %52 : vector<128x128xf32> to vector<128x128xbf16>
      %cst_27 = arith.constant dense<0.000000e+00> : vector<128x16xf32>
      %60 = tpu.matmul %59, %37, %cst_27 {dimension_numbers = #tpu.dot_dimension_numbers<[1], [0], [0], [1], [0, 0, 1, 1], [], []>} : vector<128x128xbf16>, vector<128x16xbf16>, vector<128x16xf32> -> vector<128x16xf32>
      %61 = arith.addf %58, %60 : vector<128x16xf32>
      scf.yield %47, %56, %61 : vector<128x1xf32>, vector<128x1xf32>, vector<128x16xf32>
    }
    %cst_7 = arith.constant 1.000000e+00 : f32
    %15 = vector.broadcast %cst_7 : f32 to vector<128x1xf32>
    %16 = arith.divf %15, %14#1 : vector<128x1xf32>
    %17 = vector.broadcast %16 : vector<128x1xf32> to vector<128x16xf32>
    %18 = arith.mulf %14#2, %17 : vector<128x16xf32>
    %19 = arith.truncf %18 : vector<128x16xf32> to vector<128x16xbf16>
    %c0_8 = arith.constant 0 : index
    %c0_9 = arith.constant 0 : index
    %c0_10 = arith.constant 0 : index
    %20 = vector.load %arg8[%c0_8, %c0_9, %c0_10] : memref<1x128x64xf32, #tpu.memory_space<vmem>>, vector<1x128x64xf32>
    %21 = vector.shape_cast %20 : vector<1x128x64xf32> to vector<128x64xf32>
    %22 = arith.index_cast %arg2 : i32 to index
    %c0_11 = arith.constant 0 : index
    %c0_12 = arith.constant 0 : index
    %23 = vector.load %arg6[%22, %c0_11, %c0_12] : memref<4x16x64xbf16, #tpu.memory_space<vmem>>, vector<1x16x64xbf16>
    %24 = vector.shape_cast %23 : vector<1x16x64xbf16> to vector<16x64xbf16>
    %cst_13 = arith.constant dense<0.000000e+00> : vector<128x64xf32>
    %25 = tpu.matmul %19, %24, %cst_13 {dimension_numbers = #tpu.dot_dimension_numbers<[1], [0], [0], [1], [0, 0, 1, 1], [], []>} : vector<128x16xbf16>, vector<16x64xbf16>, vector<128x64xf32> -> vector<128x64xf32>
    %26 = arith.addf %21, %25 : vector<128x64xf32>
    %c0_14 = arith.constant 0 : index
    %c0_15 = arith.constant 0 : index
    %c0_16 = arith.constant 0 : index
    %27 = vector.load %arg8[%c0_14, %c0_15, %c0_16] : memref<1x128x64xf32, #tpu.memory_space<vmem>>, vector<1x128x64xf32>
    %28 = vector.shape_cast %27 : vector<1x128x64xf32> to vector<128x64xf32>
    %29 = vector.shape_cast %26 : vector<128x64xf32> to vector<1x128x64xf32>
    tpu.vector_store %arg8[%c0_14, %c0_15, %c0_16], %29 {strides = array<i32>} : memref<1x128x64xf32, #tpu.memory_space<vmem>>, vector<1x128x64xf32>,
    return
  }
  func.func @transform_0(%arg0: i32, %arg1: i32, %arg2: i32) -> (i32, i32, i32, i32) {
    %c0_i32 = arith.constant 0 : i32
    %c0_i32_0 = arith.constant 0 : i32
    return %arg0, %arg2, %arg1, %c0_i32 : i32, i32, i32, i32
  }
  func.func @transform_1(%arg0: i32, %arg1: i32, %arg2: i32) -> (i32, i32, i32, i32) {
    %c0_i32 = arith.constant 0 : i32
    %c0_i32_0 = arith.constant 0 : i32
    %c0_i32_1 = arith.constant 0 : i32
    return %arg0, %arg2, %c0_i32, %c0_i32_0 : i32, i32, i32, i32
  }
  func.func @transform_2(%arg0: i32, %arg1: i32, %arg2: i32) -> (i32, i32, i32, i32) {
    %c0_i32 = arith.constant 0 : i32
    %c0_i32_0 = arith.constant 0 : i32
    %c0_i32_1 = arith.constant 0 : i32
    return %arg0, %arg2, %c0_i32, %c0_i32_0 : i32, i32, i32, i32
  }
  func.func @transform_3(%arg0: i32, %arg1: i32, %arg2: i32) -> (i32, i32, i32) {
    %c0_i32 = arith.constant 0 : i32
    %c0_i32_0 = arith.constant 0 : i32
    %c0_i32_1 = arith.constant 0 : i32
    %c0_i32_2 = arith.constant 0 : i32
    return %c0_i32, %c0_i32_0, %c0_i32_1 : i32, i32, i32
  }
  func.func @transform_4(%arg0: i32, %arg1: i32, %arg2: i32) -> (i32, i32) {
    %c0_i32 = arith.constant 0 : i32
    %c0_i32_0 = arith.constant 0 : i32
    %c0_i32_1 = arith.constant 0 : i32
    return %c0_i32, %c0_i32_0 : i32, i32
  }
  func.func @transform_5(%arg0: i32, %arg1: i32, %arg2: i32) -> (i32, i32, i32) {
    %c0_i32 = arith.constant 0 : i32
    %c0_i32_0 = arith.constant 0 : i32
    return %arg0, %arg1, %c0_i32 : i32, i32, i32
  }
}

</mosaic_0001>

<llo_original>
// kernel: mha_sdpa_without_flash.2
$region0: #{mha_sdpa_without_flash.2}
  #allocation0 [shape = 'u32[]', space=smem, size = 0x4, offset = 0x4, fixed_abs, tag = 'smem constant byte address 0x4 - core index']
  #allocation1 [shape = 'u32[72,128]{1,0:T(1,128)}', space=vmem, size = 0x9000, scoped, tag = 'internal scratch']
  %s0 = inlined_call_operand.vmem [shape: f32[2,256,64], index: 0, kind: input, shape index: {}]
  %s1 = inlined_call_operand.vmem [shape: bf16[64,192], index: 1, kind: input, shape index: {}]
  %s2 = inlined_call_operand.vmem [shape: bf16[2,256,192], index: 2, kind: output, shape index: {}]
  %s3 = sld [smem:[#allocation0]]
  $region41: #{mha_sdpa_without_flash.2} parent=0
    _
  %s5 = ssub.s32 1, %s3
  %s6 = scalar_select 0, %s5, %s3
  loop: start=0, step=1, limit=4
  $region2: #{mha_sdpa_without_flash.2} parent=0 // loop_pre_header
    _
  $region3: #{mha_sdpa_without_flash.2} parent=0 // loop_header
    %s8 = sphi 0, %s12
    %p9 = scmp.ge.s32.totalorder %s8, 4
    %s15 = sphi 0, %s27
    %s16 = sphi 0, %s23
    %s17 = sphi 0, %s15
    %s18 = sphi 0, %s16
    %s19 = sphi 0, %s17
    %s20 = sphi 0, %s18
    %s32 = sphi 0, %s34
    %s35 = sphi 0, %s32
    %s36 = sphi 0, %s35
    %s52 = sphi 0, %s36
    %s56 = sphi 0, %s56
    %s58 = sphi 0, %s56
    %s59 = sphi 0, %s58
    %s73 = sphi 0, %s59
    %s81 = sphi 0, %s83
    %s84 = sphi 0, %s81
    %s85 = sphi 0, %s84
    %s101 = sphi 0, %s85
  $region4: #{mha_sdpa_without_flash.2} parent=0 // loop_header_branch
    %11 = sbr.rel (%p9) target = $region8
  $region5: #{mha_sdpa_without_flash.2} parent=0 // loop_body
    %s13 = ssub.s32 %s8, 1
    %s14 = ssub.s32 %s8, 2
    %s21 = sadd.s32 1, %s16
    %p22 = scmp.ge.s32.totalorder %s21, 1
    %s23 = scalar_select %p22, 0, %s21
    %s24 = sadd.s32 1, %s15
    %s25 = scalar_select %p22, %s24, %s15
    %p26 = scmp.ge.s32.totalorder %s25, 2
    %s27 = scalar_select %p26, 0, %s25
    %s28 = ssub.s32 %s15, %s27
    %s29 = ssub.s32 %s16, %s23
    %s30 = sor.u32 %s28, %s29
    %p31 = scmp.eq.s32.totalorder %s30, 0
    %s33 = sadd.s32 %s32, 1
    %s34 = scalar_select %p31, %s32, %s33
    %p37 = pneg %p31
    %p38 = scmp.eq.s32.totalorder %s8, 1
    %p39 = por %p37, %p38
    %p40 = scmp.ne.s32.totalorder %s32, %s35
    %p41 = scmp.eq.s32.totalorder %s8, 0
    %p42 = por %p40, %p41
    %p43 = scmp.ne.s32.totalorder %s32, %s35
    %p44 = scmp.eq.s32.totalorder %s13, 1
    %p45 = por %p43, %p44
    %p46 = scmp.ne.s32.totalorder %s35, %s36
    %p47 = scmp.eq.s32.totalorder %s13, 0
    %p48 = por %p46, %p47
    %p49 = scmp.ne.s32.totalorder %s35, %s36
    %p50 = scmp.eq.s32.totalorder %s14, 1
    %p51 = por %p49, %p50
    %p53 = scmp.ne.s32.totalorder %s36, %s52
    %p54 = scmp.eq.s32.totalorder %s14, 0
    %p55 = por %p53, %p54
    %s57 = sadd.s32 %s56, 1
    %p60 = scmp.eq.s32.totalorder %s8, 1
    %p61 = scmp.ne.s32.totalorder %s56, %s58
    %p62 = scmp.eq.s32.totalorder %s8, 0
    %p63 = por %p61, %p62
    %p64 = scmp.ne.s32.totalorder %s56, %s58
    %p65 = scmp.eq.s32.totalorder %s13, 1
    %p66 = por %p64, %p65
    %p67 = scmp.ne.s32.totalorder %s58, %s59
    %p68 = scmp.eq.s32.totalorder %s13, 0
    %p69 = por %p67, %p68
    %p70 = scmp.ne.s32.totalorder %s58, %s59
    %p71 = scmp.eq.s32.totalorder %s14, 1
    %p72 = por %p70, %p71
    %p74 = scmp.ne.s32.totalorder %s59, %s73
    %p75 = scmp.eq.s32.totalorder %s14, 0
    %p76 = por %p74, %p75
    %s77 = ssub.s32 %s15, %s27
    %s78 = ssub.s32 %s16, %s23
    %s79 = sor.u32 %s77, %s78
    %p80 = scmp.eq.s32.totalorder %s79, 0
    %s82 = sadd.s32 %s81, 1
    %s83 = scalar_select %p80, %s81, %s82
    %p86 = pneg %p80
    %p87 = scmp.eq.s32.totalorder %s8, 1
    %p88 = por %p86, %p87
    %p89 = scmp.ne.s32.totalorder %s81, %s84
    %p90 = scmp.eq.s32.totalorder %s8, 0
    %p91 = por %p89, %p90
    %p92 = scmp.ne.s32.totalorder %s81, %s84
    %p93 = scmp.eq.s32.totalorder %s13, 1
    %p94 = por %p92, %p93
    %p95 = scmp.ne.s32.totalorder %s84, %s85
    %p96 = scmp.eq.s32.totalorder %s13, 0
    %p97 = por %p95, %p96
    %p98 = scmp.ne.s32.totalorder %s84, %s85
    %p99 = scmp.eq.s32.totalorder %s14, 1
    %p100 = por %p98, %p99
    %p102 = scmp.ne.s32.totalorder %s85, %s101
    %p103 = scmp.eq.s32.totalorder %s14, 0
    %p104 = por %p102, %p103
    %p105 = scmp.le.s32.totalorder 1, %s8
    %p106 = scmp.lt.s32.totalorder %s8, 3
    %p107 = pnand %p105, %p106
    %p108 = pneg %p107
    // Predicated region
    $region9: #{mha_sdpa_without_flash.2} parent=5 // pred_check
      _
    $region10: #{mha_sdpa_without_flash.2} parent=5 // pred_check_branch
      %110 = sbr.rel (%p107) target = $region12
    $region11: #{mha_sdpa_without_flash.2} parent=5 // pred_region
      %s111 = ssub.s32 %s8, 1
      // Predicated region
      $region13: #{mha_sdpa_without_flash.2} parent=11 // pred_check
        %p112 = pneg %p69
      $region14: #{mha_sdpa_without_flash.2} parent=11 // pred_check_branch
        %114 = sbr.rel (%p112) target = $region16
      $region15: #{mha_sdpa_without_flash.2} parent=11 // pred_region
        _
      $region16: #{mha_sdpa_without_flash.2} parent=11 // pred_fallthru
        _
    $region12: #{mha_sdpa_without_flash.2} parent=5 // pred_fallthru
      _
    %p115 = scmp.lt.s32.totalorder %s8, 2
    // Predicated region
    $region17: #{mha_sdpa_without_flash.2} parent=5 // pred_check
      %p116 = pneg %p115
    $region18: #{mha_sdpa_without_flash.2} parent=5 // pred_check_branch
      %118 = sbr.rel (%p116) target = $region20
    $region19: #{mha_sdpa_without_flash.2} parent=5 // pred_region
      // Predicated region
      $region21: #{mha_sdpa_without_flash.2} parent=19 // pred_check
        %p119 = pneg %p42
      $region22: #{mha_sdpa_without_flash.2} parent=19 // pred_check_branch
        %121 = sbr.rel (%p119) target = $region24
      $region23: #{mha_sdpa_without_flash.2} parent=19 // pred_region
        %s122 = smul.u32 32, %s16
        %p123 = scmp.lt.s32.totalorder %s15, 1
        %s124 = scalar_select %p123, %s15, 1
        %p125 = scmp.lt.s32.totalorder %s122, 31
        %s126 = scalar_select %p125, %s122, 31
        %s127 = smul.addr %s124, 32
        %s128 = sadd.s32 %s126, %s127
        %s129 = smul.addr %s128, 8
        %s130 = scalar_lea.vmem %s0, %s129
        %s131 = smul.u32 32, %s16
      $region24: #{mha_sdpa_without_flash.2} parent=19 // pred_fallthru
        _
    $region20: #{mha_sdpa_without_flash.2} parent=5 // pred_fallthru
      _
    %p132 = scmp.le.s32.totalorder 1, %s8
    %p133 = scmp.lt.s32.totalorder %s8, 3
    %p134 = pnand %p132, %p133
    %p135 = pneg %p134
    // Predicated region
    $region25: #{mha_sdpa_without_flash.2} parent=5 // pred_check
      _
    $region26: #{mha_sdpa_without_flash.2} parent=5 // pred_check_branch
      %137 = sbr.rel (%p134) target = $region28
    $region27: #{mha_sdpa_without_flash.2} parent=5 // pred_region
      %s138 = ssub.s32 %s8, 1
      %s139 = smul.u32 32, %s18
      %p140 = scmp.lt.s32.totalorder %s17, 1
      %s141 = scalar_select %p140, %s17, 1
      %p142 = scmp.lt.s32.totalorder %s139, 31
      %s143 = scalar_select %p142, %s139, 31
      %s144 = smul.addr %s141, 32
      %s145 = sadd.s32 %s143, %s144
      %s146 = smul.addr %s145, 8
      %s147 = scalar_lea.vmem %s0, %s146
      %p148 = pneg %p48
      %p149 = pneg %p45
      %p150 = pneg %p69
      %p151 = pneg %p66
      %p152 = pneg %p97
      %p153 = pneg %p94
      %s154 = smul.u32 32, %s18
      %p155 = scmp.lt.s32.totalorder %s17, 1
      %s156 = scalar_select %p155, %s17, 1
      %p157 = scmp.lt.s32.totalorder %s154, 31
      %s158 = scalar_select %p157, %s154, 31
      %s159 = smul.addr %s158, 2
      %s160 = smul.addr %s156, 64
      %s161 = sadd.s32 %s159, %s160
      %s162 = smul.addr %s161, 4
      %s163 = scalar_lea.vmem %s2, %s162
      %s164 = smul.u32 32, %s18
      %p165 = scmp.lt.s32.totalorder %s17, 1
      %s166 = scalar_select %p165, %s17, 1
      %p167 = scmp.lt.s32.totalorder %s164, 31
      %s168 = scalar_select %p167, %s164, 31
      %s169 = smul.addr %s166, 32
      %s170 = sadd.s32 %s168, %s169
      %s171 = smul.addr %s170, 8
      %s172 = scalar_lea.vmem %s0, %s171
      %s173 = smul.u32 32, %s18
      %s174 = smul.u32 32, %s18
      %p175 = scmp.lt.s32.totalorder %s17, 1
      %s176 = scalar_select %p175, %s17, 1
      %p177 = scmp.lt.s32.totalorder %s174, 31
      %s178 = scalar_select %p177, %s174, 31
      %s179 = smul.addr %s178, 2
      %s180 = smul.addr %s176, 64
      %s181 = sadd.s32 %s179, %s180
      %s182 = smul.addr %s181, 4
      %s183 = scalar_lea.vmem %s2, %s182
      %s184 = smul.u32 32, %s18
      %v186 = vld [vmem:[%s172] sm:$0xff]
      %v187 = vld [vmem:[%s172 + $0x8] sm:$0xff]
      %v188 = vld [vmem:[%s172 + $0x10] sm:$0xff]
      %v189 = vld [vmem:[%s172 + $0x18] sm:$0xff]
      %v190 = vld [vmem:[%s172 + $0x20] sm:$0xff]
      %v191 = vld [vmem:[%s172 + $0x28] sm:$0xff]
      %v192 = vld [vmem:[%s172 + $0x30] sm:$0xff]
      %v193 = vld [vmem:[%s172 + $0x38] sm:$0xff]
      %v194 = vld [vmem:[%s172 + $0x40] sm:$0xff]
      %v195 = vld [vmem:[%s172 + $0x48] sm:$0xff]
      %v196 = vld [vmem:[%s172 + $0x50] sm:$0xff]
      %v197 = vld [vmem:[%s172 + $0x58] sm:$0xff]
      %v198 = vld [vmem:[%s172 + $0x60] sm:$0xff]
      %v199 = vld [vmem:[%s172 + $0x68] sm:$0xff]
      %v200 = vld [vmem:[%s172 + $0x70] sm:$0xff]
      %v201 = vld [vmem:[%s172 + $0x78] sm:$0xff]
      %v202 = vld [vmem:[%s172 + $0x80] sm:$0xff]
      %v203 = vld [vmem:[%s172 + $0x88] sm:$0xff]
      %v204 = vld [vmem:[%s172 + $0x90] sm:$0xff]
      %v205 = vld [vmem:[%s172 + $0x98] sm:$0xff]
      %v206 = vld [vmem:[%s172 + $0xa0] sm:$0xff]
      %v207 = vld [vmem:[%s172 + $0xa8] sm:$0xff]
      %v208 = vld [vmem:[%s172 + $0xb0] sm:$0xff]
      %v209 = vld [vmem:[%s172 + $0xb8] sm:$0xff]
      %v210 = vld [vmem:[%s172 + $0xc0] sm:$0xff]
      %v211 = vld [vmem:[%s172 + $0xc8] sm:$0xff]
      %v212 = vld [vmem:[%s172 + $0xd0] sm:$0xff]
      %v213 = vld [vmem:[%s172 + $0xd8] sm:$0xff]
      %v214 = vld [vmem:[%s172 + $0xe0] sm:$0xff]
      %v215 = vld [vmem:[%s172 + $0xe8] sm:$0xff]
      %v216 = vld [vmem:[%s172 + $0xf0] sm:$0xff]
      %v217 = vld [vmem:[%s172 + $0xf8] sm:$0xff]
      %v218 = vpack.c.bf16 %v187, %v186
      %v219 = vpack.c.bf16 %v189, %v188
      %v220 = vpack.c.bf16 %v191, %v190
      %v221 = vpack.c.bf16 %v193, %v192
      %v222 = vpack.c.bf16 %v195, %v194
      %v223 = vpack.c.bf16 %v197, %v196
      %v224 = vpack.c.bf16 %v199, %v198
      %v225 = vpack.c.bf16 %v201, %v200
      %v226 = vpack.c.bf16 %v203, %v202
      %v227 = vpack.c.bf16 %v205, %v204
      %v228 = vpack.c.bf16 %v207, %v206
      %v229 = vpack.c.bf16 %v209, %v208
      %v230 = vpack.c.bf16 %v211, %v210
      %v231 = vpack.c.bf16 %v213, %v212
      %v232 = vpack.c.bf16 %v215, %v214
      %v233 = vpack.c.bf16 %v217, %v216
      %v234 = vld [vmem:[%s1] sm:$0xff]
      %v235 = vld [vmem:[%s1 + $0x8] sm:$0xff]
      %v236 = vld [vmem:[%s1 + $0x10] sm:$0xff]
      %v237 = vld [vmem:[%s1 + $0x18] sm:$0xff]
      %v238 = vld [vmem:[%s1 + $0x20] sm:$0xff]
      %v239 = vld [vmem:[%s1 + $0x28] sm:$0xff]
      %v240 = vld [vmem:[%s1 + $0x30] sm:$0xff]
      %v241 = vld [vmem:[%s1 + $0x38] sm:$0xff]
      %v250 = vunpack.c.l.b16 %v234
      %v251 = vunpack.c.h.b16 %v234
      %v252 = vunpack.c.l.b16 %v235
      %v253 = vunpack.c.h.b16 %v235
      %v254 = vunpack.c.l.b16 %v236
      %v255 = vunpack.c.h.b16 %v236
      %v256 = vunpack.c.l.b16 %v237
      %v257 = vunpack.c.h.b16 %v237
      %v258 = vunpack.c.l.b16 %v238
      %v259 = vunpack.c.h.b16 %v238
      %v260 = vunpack.c.l.b16 %v239
      %v261 = vunpack.c.h.b16 %v239
      %v262 = vunpack.c.l.b16 %v240
      %v263 = vunpack.c.h.b16 %v240
      %v264 = vunpack.c.l.b16 %v241
      %v265 = vunpack.c.h.b16 %v241
      %v266 = vpack.c.b16 %v252, %v250
      %v267 = vpack.c.b16 %v253, %v251
      %v268 = vpack.c.b16 %v256, %v254
      %v269 = vpack.c.b16 %v257, %v255
      %v270 = vpack.c.b16 %v260, %v258
      %v271 = vpack.c.b16 %v261, %v259
      %v272 = vpack.c.b16 %v264, %v262
      %v273 = vpack.c.b16 %v265, %v263
      %vm282 = vcmask 523264
      %v284 = vsel %vm282, %v218, 0
      %v287 = vsel %vm282, %v219, 0
      %v290 = vsel %vm282, %v220, 0
      %v293 = vsel %vm282, %v221, 0
      %v296 = vsel %vm282, %v222, 0
      %v299 = vsel %vm282, %v223, 0
      %v302 = vsel %vm282, %v224, 0
      %v305 = vsel %vm282, %v225, 0
      %v308 = vsel %vm282, %v226, 0
      %v311 = vsel %vm282, %v227, 0
      %v314 = vsel %vm282, %v228, 0
      %v317 = vsel %vm282, %v229, 0
      %v320 = vsel %vm282, %v230, 0
      %v323 = vsel %vm282, %v231, 0
      %v326 = vsel %vm282, %v232, 0
      %v329 = vsel %vm282, %v233, 0
      %331 = vmatpush.bf16.msra.mxu0 0
      %332 = vmatpush.bf16.msra.mxu0 0
      %333 = vmatpush.bf16.msra.mxu0 0
      %334 = vmatpush.bf16.msra.mxu0 0
      %335 = vmatpush.bf16.msra.mxu0 %v272
      %336 = vmatpush.bf16.msra.mxu0 %v270
      %337 = vmatpush.bf16.msra.mxu0 %v268
      %338 = vmatpush.bf16.msra.mxu0 %v266
      %339 = vmatmul.bf16.gmra.mxu0 %v284
      %v340 = vpop.f32.mrf.mxu0
      %v341 = vadd.f32 0.0, %v340
      %v342 = vpop.f32.mrf.mxu0
      %v343 = vadd.f32 0.0, %v342
      %344 = vmatmul.bf16.gmra.mxu0 %v287
      %v345 = vpop.f32.mrf.mxu0
      %v346 = vadd.f32 0.0, %v345
      %v347 = vpop.f32.mrf.mxu0
      %v348 = vadd.f32 0.0, %v347
      %349 = vmatmul.bf16.gmra.mxu0 %v290
      %v350 = vpop.f32.mrf.mxu0
      %v351 = vadd.f32 0.0, %v350
      %v352 = vpop.f32.mrf.mxu0
      %v353 = vadd.f32 0.0, %v352
      %354 = vmatmul.bf16.gmra.mxu0 %v293
      %v355 = vpop.f32.mrf.mxu0
      %v356 = vadd.f32 0.0, %v355
      %v357 = vpop.f32.mrf.mxu0
      %v358 = vadd.f32 0.0, %v357
      %359 = vmatmul.bf16.gmra.mxu0 %v296
      %v360 = vpop.f32.mrf.mxu0
      %v361 = vadd.f32 0.0, %v360
      %v362 = vpop.f32.mrf.mxu0
      %v363 = vadd.f32 0.0, %v362
      %364 = vmatmul.bf16.gmra.mxu0 %v299
      %v365 = vpop.f32.mrf.mxu0
      %v366 = vadd.f32 0.0, %v365
      %v367 = vpop.f32.mrf.mxu0
      %v368 = vadd.f32 0.0, %v367
      %369 = vmatmul.bf16.gmra.mxu0 %v302
      %v370 = vpop.f32.mrf.mxu0
      %v371 = vadd.f32 0.0, %v370
      %v372 = vpop.f32.mrf.mxu0
      %v373 = vadd.f32 0.0, %v372
      %374 = vmatmul.bf16.gmra.mxu0 %v305
      %v375 = vpop.f32.mrf.mxu0
      %v376 = vadd.f32 0.0, %v375
      %v377 = vpop.f32.mrf.mxu0
      %v378 = vadd.f32 0.0, %v377
      %379 = vmatmul.bf16.gmra.mxu0 %v308
      %v380 = vpop.f32.mrf.mxu0
      %v381 = vadd.f32 0.0, %v380
      %v382 = vpop.f32.mrf.mxu0
      %v383 = vadd.f32 0.0, %v382
      %384 = vmatmul.bf16.gmra.mxu0 %v311
      %v385 = vpop.f32.mrf.mxu0
      %v386 = vadd.f32 0.0, %v385
      %v387 = vpop.f32.mrf.mxu0
      %v388 = vadd.f32 0.0, %v387
      %389 = vmatmul.bf16.gmra.mxu0 %v314
      %v390 = vpop.f32.mrf.mxu0
      %v391 = vadd.f32 0.0, %v390
      %v392 = vpop.f32.mrf.mxu0
      %v393 = vadd.f32 0.0, %v392
      %394 = vmatmul.bf16.gmra.mxu0 %v317
      %v395 = vpop.f32.mrf.mxu0
      %v396 = vadd.f32 0.0, %v395
      %v397 = vpop.f32.mrf.mxu0
      %v398 = vadd.f32 0.0, %v397
      %399 = vmatmul.bf16.gmra.mxu0 %v320
      %v400 = vpop.f32.mrf.mxu0
      %v401 = vadd.f32 0.0, %v400
      %v402 = vpop.f32.mrf.mxu0
      %v403 = vadd.f32 0.0, %v402
      %404 = vmatmul.bf16.gmra.mxu0 %v323
      %v405 = vpop.f32.mrf.mxu0
      %v406 = vadd.f32 0.0, %v405
      %v407 = vpop.f32.mrf.mxu0
      %v408 = vadd.f32 0.0, %v407
      %409 = vmatmul.bf16.gmra.mxu0 %v326
      %v410 = vpop.f32.mrf.mxu0
      %v411 = vadd.f32 0.0, %v410
      %v412 = vpop.f32.mrf.mxu0
      %v413 = vadd.f32 0.0, %v412
      %414 = vmatmul.bf16.gmra.mxu0 %v329
      %v415 = vpop.f32.mrf.mxu0
      %v416 = vadd.f32 0.0, %v415
      %v417 = vpop.f32.mrf.mxu0
      %v418 = vadd.f32 0.0, %v417
      %419 = vdwg.mxu0
      %420 = vmatpush.bf16.msra.mxu0 0
      %421 = vmatpush.bf16.msra.mxu0 0
      %422 = vmatpush.bf16.msra.mxu0 0
      %423 = vmatpush.bf16.msra.mxu0 0
      %424 = vmatpush.bf16.msra.mxu0 %v273
      %425 = vmatpush.bf16.msra.mxu0 %v271
      %426 = vmatpush.bf16.msra.mxu0 %v269
      %427 = vmatpush.bf16.msra.mxu0 %v267
      %428 = vmatmul.bf16.gmra.mxu0 %v284
      %v429 = vpop.f32.mrf.mxu0
      %v430 = vadd.f32 0.0, %v429
      %v431 = vpop.f32.mrf.mxu0
      %v432 = vadd.f32 0.0, %v431
      %433 = vmatmul.bf16.gmra.mxu0 %v287
      %v434 = vpop.f32.mrf.mxu0
      %v435 = vadd.f32 0.0, %v434
      %v436 = vpop.f32.mrf.mxu0
      %v437 = vadd.f32 0.0, %v436
      %438 = vmatmul.bf16.gmra.mxu0 %v290
      %v439 = vpop.f32.mrf.mxu0
      %v440 = vadd.f32 0.0, %v439
      %v441 = vpop.f32.mrf.mxu0
      %v442 = vadd.f32 0.0, %v441
      %443 = vmatmul.bf16.gmra.mxu0 %v293
      %v444 = vpop.f32.mrf.mxu0
      %v445 = vadd.f32 0.0, %v444
      %v446 = vpop.f32.mrf.mxu0
      %v447 = vadd.f32 0.0, %v446
      %448 = vmatmul.bf16.gmra.mxu0 %v296
      %v449 = vpop.f32.mrf.mxu0
      %v450 = vadd.f32 0.0, %v449
      %v451 = vpop.f32.mrf.mxu0
      %v452 = vadd.f32 0.0, %v451
      %453 = vmatmul.bf16.gmra.mxu0 %v299
      %v454 = vpop.f32.mrf.mxu0
      %v455 = vadd.f32 0.0, %v454
      %v456 = vpop.f32.mrf.mxu0
      %v457 = vadd.f32 0.0, %v456
      %458 = vmatmul.bf16.gmra.mxu0 %v302
      %v459 = vpop.f32.mrf.mxu0
      %v460 = vadd.f32 0.0, %v459
      %v461 = vpop.f32.mrf.mxu0
      %v462 = vadd.f32 0.0, %v461
      %463 = vmatmul.bf16.gmra.mxu0 %v305
      %v464 = vpop.f32.mrf.mxu0
      %v465 = vadd.f32 0.0, %v464
      %v466 = vpop.f32.mrf.mxu0
      %v467 = vadd.f32 0.0, %v466
      %468 = vmatmul.bf16.gmra.mxu0 %v308
      %v469 = vpop.f32.mrf.mxu0
      %v470 = vadd.f32 0.0, %v469
      %v471 = vpop.f32.mrf.mxu0
      %v472 = vadd.f32 0.0, %v471
      %473 = vmatmul.bf16.gmra.mxu0 %v311
      %v474 = vpop.f32.mrf.mxu0
      %v475 = vadd.f32 0.0, %v474
      %v476 = vpop.f32.mrf.mxu0
      %v477 = vadd.f32 0.0, %v476
      %478 = vmatmul.bf16.gmra.mxu0 %v314
      %v479 = vpop.f32.mrf.mxu0
      %v480 = vadd.f32 0.0, %v479
      %v481 = vpop.f32.mrf.mxu0
      %v482 = vadd.f32 0.0, %v481
      %483 = vmatmul.bf16.gmra.mxu0 %v317
      %v484 = vpop.f32.mrf.mxu0
      %v485 = vadd.f32 0.0, %v484
      %v486 = vpop.f32.mrf.mxu0
      %v487 = vadd.f32 0.0, %v486
      %488 = vmatmul.bf16.gmra.mxu0 %v320
      %v489 = vpop.f32.mrf.mxu0
      %v490 = vadd.f32 0.0, %v489
      %v491 = vpop.f32.mrf.mxu0
      %v492 = vadd.f32 0.0, %v491
      %493 = vmatmul.bf16.gmra.mxu0 %v323
      %v494 = vpop.f32.mrf.mxu0
      %v495 = vadd.f32 0.0, %v494
      %v496 = vpop.f32.mrf.mxu0
      %v497 = vadd.f32 0.0, %v496
      %498 = vmatmul.bf16.gmra.mxu0 %v326
      %v499 = vpop.f32.mrf.mxu0
      %v500 = vadd.f32 0.0, %v499
      %v501 = vpop.f32.mrf.mxu0
      %v502 = vadd.f32 0.0, %v501
      %503 = vmatmul.bf16.gmra.mxu0 %v329
      %v504 = vpop.f32.mrf.mxu0
      %v505 = vadd.f32 0.0, %v504
      %v506 = vpop.f32.mrf.mxu0
      %v507 = vadd.f32 0.0, %v506
      %508 = vdwg.mxu0
      %v509 = vpack.c.bf16 %v430, %v341
      %v510 = vpack.c.bf16 %v432, %v343
      %v511 = vpack.c.bf16 %v435, %v346
      %v512 = vpack.c.bf16 %v437, %v348
      %v513 = vpack.c.bf16 %v440, %v351
      %v514 = vpack.c.bf16 %v442, %v353
      %v515 = vpack.c.bf16 %v445, %v356
      %v516 = vpack.c.bf16 %v447, %v358
      %v517 = vpack.c.bf16 %v450, %v361
      %v518 = vpack.c.bf16 %v452, %v363
      %v519 = vpack.c.bf16 %v455, %v366
      %v520 = vpack.c.bf16 %v457, %v368
      %v521 = vpack.c.bf16 %v460, %v371
      %v522 = vpack.c.bf16 %v462, %v373
      %v523 = vpack.c.bf16 %v465, %v376
      %v524 = vpack.c.bf16 %v467, %v378
      %v525 = vpack.c.bf16 %v470, %v381
      %v526 = vpack.c.bf16 %v472, %v383
      %v527 = vpack.c.bf16 %v475, %v386
      %v528 = vpack.c.bf16 %v477, %v388
      %v529 = vpack.c.bf16 %v480, %v391
      %v530 = vpack.c.bf16 %v482, %v393
      %v531 = vpack.c.bf16 %v485, %v396
      %v532 = vpack.c.bf16 %v487, %v398
      %v533 = vpack.c.bf16 %v490, %v401
      %v534 = vpack.c.bf16 %v492, %v403
      %v535 = vpack.c.bf16 %v495, %v406
      %v536 = vpack.c.bf16 %v497, %v408
      %v537 = vpack.c.bf16 %v500, %v411
      %v538 = vpack.c.bf16 %v502, %v413
      %v539 = vpack.c.bf16 %v505, %v416
      %v540 = vpack.c.bf16 %v507, %v418
      %vm541 = vcmask 1043456
      %vm542 = vcmask 523268
      %vm543 = vmor %vm542, %vm541
      %544 = vst.msk [vmem:[%s183] sm:$0xff] %vm543, %v509
      %545 = vst.msk [vmem:[%s183 + $0x8] sm:$0xff] %vm543, %v510
      %546 = vst.msk [vmem:[%s183 + $0x10] sm:$0xff] %vm543, %v511
      %547 = vst.msk [vmem:[%s183 + $0x18] sm:$0xff] %vm543, %v512
      %548 = vst.msk [vmem:[%s183 + $0x20] sm:$0xff] %vm543, %v513
      %549 = vst.msk [vmem:[%s183 + $0x28] sm:$0xff] %vm543, %v514
      %550 = vst.msk [vmem:[%s183 + $0x30] sm:$0xff] %vm543, %v515
      %551 = vst.msk [vmem:[%s183 + $0x38] sm:$0xff] %vm543, %v516
      %552 = vst.msk [vmem:[%s183 + $0x40] sm:$0xff] %vm543, %v517
      %553 = vst.msk [vmem:[%s183 + $0x48] sm:$0xff] %vm543, %v518
      %554 = vst.msk [vmem:[%s183 + $0x50] sm:$0xff] %vm543, %v519
      %555 = vst.msk [vmem:[%s183 + $0x58] sm:$0xff] %vm543, %v520
      %556 = vst.msk [vmem:[%s183 + $0x60] sm:$0xff] %vm543, %v521
      %557 = vst.msk [vmem:[%s183 + $0x68] sm:$0xff] %vm543, %v522
      %558 = vst.msk [vmem:[%s183 + $0x70] sm:$0xff] %vm543, %v523
      %559 = vst.msk [vmem:[%s183 + $0x78] sm:$0xff] %vm543, %v524
      %560 = vst.msk [vmem:[%s183 + $0x80] sm:$0xff] %vm543, %v525
      %561 = vst.msk [vmem:[%s183 + $0x88] sm:$0xff] %vm543, %v526
      %562 = vst.msk [vmem:[%s183 + $0x90] sm:$0xff] %vm543, %v527
      %563 = vst.msk [vmem:[%s183 + $0x98] sm:$0xff] %vm543, %v528
      %564 = vst.msk [vmem:[%s183 + $0xa0] sm:$0xff] %vm543, %v529
      %565 = vst.msk [vmem:[%s183 + $0xa8] sm:$0xff] %vm543, %v530
      %566 = vst.msk [vmem:[%s183 + $0xb0] sm:$0xff] %vm543, %v531
      %567 = vst.msk [vmem:[%s183 + $0xb8] sm:$0xff] %vm543, %v532
      %568 = vst.msk [vmem:[%s183 + $0xc0] sm:$0xff] %vm543, %v533
      %569 = vst.msk [vmem:[%s183 + $0xc8] sm:$0xff] %vm543, %v534
      %570 = vst.msk [vmem:[%s183 + $0xd0] sm:$0xff] %vm543, %v535
      %571 = vst.msk [vmem:[%s183 + $0xd8] sm:$0xff] %vm543, %v536
      %572 = vst.msk [vmem:[%s183 + $0xe0] sm:$0xff] %vm543, %v537
      %573 = vst.msk [vmem:[%s183 + $0xe8] sm:$0xff] %vm543, %v538
      %574 = vst.msk [vmem:[%s183 + $0xf0] sm:$0xff] %vm543, %v539
      %575 = vst.msk [vmem:[%s183 + $0xf8] sm:$0xff] %vm543, %v540
      %s576 = smul.u32 32, %s18
      %p577 = scmp.lt.s32.totalorder %s17, 1
      %s578 = scalar_select %p577, %s17, 1
      %p579 = scmp.lt.s32.totalorder %s576, 31
      %s580 = scalar_select %p579, %s576, 31
      %s581 = smul.addr %s580, 2
      %s582 = smul.addr %s578, 64
      %s583 = sadd.s32 %s581, %s582
      %s584 = smul.addr %s583, 4
      %s585 = scalar_lea.vmem %s2, %s584
      // Predicated region
      $region29: #{mha_sdpa_without_flash.2} parent=27 // pred_check
        %p586 = pneg %p94
      $region30: #{mha_sdpa_without_flash.2} parent=27 // pred_check_branch
        %588 = sbr.rel (%p586) target = $region32
      $region31: #{mha_sdpa_without_flash.2} parent=27 // pred_region
        %s589 = smul.u32 32, %s18
      $region32: #{mha_sdpa_without_flash.2} parent=27 // pred_fallthru
        _
    $region28: #{mha_sdpa_without_flash.2} parent=5 // pred_fallthru
      _
    %p590 = scmp.le.s32.totalorder 2, %s8
    // Predicated region
    $region33: #{mha_sdpa_without_flash.2} parent=5 // pred_check
      %p591 = pneg %p590
    $region34: #{mha_sdpa_without_flash.2} parent=5 // pred_check_branch
      %593 = sbr.rel (%p591) target = $region36
    $region35: #{mha_sdpa_without_flash.2} parent=5 // pred_region
      %s594 = ssub.s32 %s8, 2
      // Predicated region
      $region37: #{mha_sdpa_without_flash.2} parent=35 // pred_check
        %p595 = pneg %p100
      $region38: #{mha_sdpa_without_flash.2} parent=35 // pred_check_branch
        %597 = sbr.rel (%p595) target = $region40
      $region39: #{mha_sdpa_without_flash.2} parent=35 // pred_region
        %s598 = smul.u32 32, %s20
        %p599 = scmp.lt.s32.totalorder %s19, 1
        %s600 = scalar_select %p599, %s19, 1
        %p601 = scmp.lt.s32.totalorder %s598, 31
        %s602 = scalar_select %p601, %s598, 31
        %s603 = smul.addr %s602, 2
        %s604 = smul.addr %s600, 64
        %s605 = sadd.s32 %s603, %s604
        %s606 = smul.addr %s605, 4
        %s607 = scalar_lea.vmem %s2, %s606
      $region40: #{mha_sdpa_without_flash.2} parent=35 // pred_fallthru
        _
    $region36: #{mha_sdpa_without_flash.2} parent=5 // pred_fallthru
      _
  $region6: #{mha_sdpa_without_flash.2} parent=0 // loop_footer
    %s12 = sadd.s32 1, %s8
  $region7: #{mha_sdpa_without_flash.2} parent=0 // loop_footer_branch
    %7 = sbr.rel target = $region3
  $region8: #{mha_sdpa_without_flash.2} parent=0 // loop_exit
    _

// kernel: mha_sdpa_without_flash.3
$region0: #{mha_sdpa_without_flash.3}
  #allocation0 [shape = 'u32[]', space=smem, size = 0x4, offset = 0x4, fixed_abs, tag = 'smem constant byte address 0x4 - core index']
  #allocation1 [shape = 'u32[72,128]{1,0:T(1,128)}', space=vmem, size = 0x9000, scoped, tag = 'internal scratch']
  %s0 = inlined_call_operand.vmem [shape: bf16[2,4,256,16], index: 0, kind: input, shape index: {}]
  %s1 = inlined_call_operand.vmem [shape: bf16[2,4,256,16], index: 1, kind: input, shape index: {}]
  %s2 = inlined_call_operand.vmem [shape: bf16[2,4,256,16], index: 2, kind: input, shape index: {}]
  %s3 = inlined_call_operand.vmem [shape: bf16[4,16,64], index: 3, kind: input, shape index: {}]
  %s4 = inlined_call_operand.vmem [shape: f32[1,64], index: 4, kind: input, shape index: {}]
  %s5 = inlined_call_operand.vmem [shape: f32[2,256,64], index: 5, kind: output, shape index: {}]
  %s6 = sld [smem:[#allocation0]]
  $region64: #{mha_sdpa_without_flash.3} parent=0
    _
  %s8 = ssub.s32 1, %s6
  %s9 = scalar_select 0, %s8, %s6
  loop: start=0, step=1, limit=18
  $region2: #{mha_sdpa_without_flash.3} parent=0 // loop_pre_header
    _
  $region3: #{mha_sdpa_without_flash.3} parent=0 // loop_header
    %s11 = sphi 0, %s15
    %p12 = scmp.ge.s32.totalorder %s11, 18
    %s18 = sphi 0, %s37
    %s19 = sphi 0, %s33
    %s20 = sphi 0, %s29
    %s21 = sphi 0, %s18
    %s22 = sphi 0, %s19
    %s23 = sphi 0, %s20
    %s24 = sphi 0, %s21
    %s25 = sphi 0, %s22
    %s26 = sphi 0, %s23
    %s44 = sphi 0, %s46
    %s47 = sphi 0, %s44
    %s48 = sphi 0, %s47
    %s64 = sphi 0, %s48
    %s72 = sphi 0, %s74
    %s75 = sphi 0, %s72
    %s76 = sphi 0, %s75
    %s92 = sphi 0, %s76
    %s100 = sphi 0, %s102
    %s103 = sphi 0, %s100
    %s104 = sphi 0, %s103
    %s120 = sphi 0, %s104
    %s124 = sphi 0, %s124
    %s126 = sphi 0, %s124
    %s127 = sphi 0, %s126
    %s141 = sphi 0, %s127
    %s145 = sphi 0, %s145
    %s147 = sphi 0, %s145
    %s148 = sphi 0, %s147
    %s162 = sphi 0, %s148
    %s170 = sphi 0, %s172
    %s173 = sphi 0, %s170
    %s174 = sphi 0, %s173
    %s190 = sphi 0, %s174
  $region4: #{mha_sdpa_without_flash.3} parent=0 // loop_header_branch
    %14 = sbr.rel (%p12) target = $region8
  $region5: #{mha_sdpa_without_flash.3} parent=0 // loop_body
    %s16 = ssub.s32 %s11, 1
    %s17 = ssub.s32 %s11, 2
    %s27 = sadd.s32 1, %s20
    %p28 = scmp.ge.s32.totalorder %s27, 4
    %s29 = scalar_select %p28, 0, %s27
    %s30 = sadd.s32 1, %s19
    %s31 = scalar_select %p28, %s30, %s19
    %p32 = scmp.ge.s32.totalorder %s31, 2
    %s33 = scalar_select %p32, 0, %s31
    %s34 = sadd.s32 1, %s18
    %s35 = scalar_select %p32, %s34, %s18
    %p36 = scmp.ge.s32.totalorder %s35, 2
    %s37 = scalar_select %p36, 0, %s35
    %s38 = ssub.s32 %s18, %s37
    %s39 = ssub.s32 %s20, %s29
    %s40 = sor.u32 %s38, %s39
    %s41 = ssub.s32 %s19, %s33
    %s42 = sor.u32 %s40, %s41
    %p43 = scmp.eq.s32.totalorder %s42, 0
    %s45 = sadd.s32 %s44, 1
    %s46 = scalar_select %p43, %s44, %s45
    %p49 = pneg %p43
    %p50 = scmp.eq.s32.totalorder %s11, 15
    %p51 = por %p49, %p50
    %p52 = scmp.ne.s32.totalorder %s44, %s47
    %p53 = scmp.eq.s32.totalorder %s11, 0
    %p54 = por %p52, %p53
    %p55 = scmp.ne.s32.totalorder %s44, %s47
    %p56 = scmp.eq.s32.totalorder %s16, 15
    %p57 = por %p55, %p56
    %p58 = scmp.ne.s32.totalorder %s47, %s48
    %p59 = scmp.eq.s32.totalorder %s16, 0
    %p60 = por %p58, %p59
    %p61 = scmp.ne.s32.totalorder %s47, %s48
    %p62 = scmp.eq.s32.totalorder %s17, 15
    %p63 = por %p61, %p62
    %p65 = scmp.ne.s32.totalorder %s48, %s64
    %p66 = scmp.eq.s32.totalorder %s17, 0
    %p67 = por %p65, %p66
    %s68 = ssub.s32 %s18, %s37
    %s69 = ssub.s32 %s20, %s29
    %s70 = sor.u32 %s68, %s69
    %p71 = scmp.eq.s32.totalorder %s70, 0
    %s73 = sadd.s32 %s72, 1
    %s74 = scalar_select %p71, %s72, %s73
    %p77 = pneg %p71
    %p78 = scmp.eq.s32.totalorder %s11, 15
    %p79 = por %p77, %p78
    %p80 = scmp.ne.s32.totalorder %s72, %s75
    %p81 = scmp.eq.s32.totalorder %s11, 0
    %p82 = por %p80, %p81
    %p83 = scmp.ne.s32.totalorder %s72, %s75
    %p84 = scmp.eq.s32.totalorder %s16, 15
    %p85 = por %p83, %p84
    %p86 = scmp.ne.s32.totalorder %s75, %s76
    %p87 = scmp.eq.s32.totalorder %s16, 0
    %p88 = por %p86, %p87
    %p89 = scmp.ne.s32.totalorder %s75, %s76
    %p90 = scmp.eq.s32.totalorder %s17, 15
    %p91 = por %p89, %p90
    %p93 = scmp.ne.s32.totalorder %s76, %s92
    %p94 = scmp.eq.s32.totalorder %s17, 0
    %p95 = por %p93, %p94
    %s96 = ssub.s32 %s18, %s37
    %s97 = ssub.s32 %s20, %s29
    %s98 = sor.u32 %s96, %s97
    %p99 = scmp.eq.s32.totalorder %s98, 0
    %s101 = sadd.s32 %s100, 1
    %s102 = scalar_select %p99, %s100, %s101
    %p105 = pneg %p99
    %p106 = scmp.eq.s32.totalorder %s11, 15
    %p107 = por %p105, %p106
    %p108 = scmp.ne.s32.totalorder %s100, %s103
    %p109 = scmp.eq.s32.totalorder %s11, 0
    %p110 = por %p108, %p109
    %p111 = scmp.ne.s32.totalorder %s100, %s103
    %p112 = scmp.eq.s32.totalorder %s16, 15
    %p113 = por %p111, %p112
    %p114 = scmp.ne.s32.totalorder %s103, %s104
    %p115 = scmp.eq.s32.totalorder %s16, 0
    %p116 = por %p114, %p115
    %p117 = scmp.ne.s32.totalorder %s103, %s104
    %p118 = scmp.eq.s32.totalorder %s17, 15
    %p119 = por %p117, %p118
    %p121 = scmp.ne.s32.totalorder %s104, %s120
    %p122 = scmp.eq.s32.totalorder %s17, 0
    %p123 = por %p121, %p122
    %s125 = sadd.s32 %s124, 1
    %p128 = scmp.eq.s32.totalorder %s11, 15
    %p129 = scmp.ne.s32.totalorder %s124, %s126
    %p130 = scmp.eq.s32.totalorder %s11, 0
    %p131 = por %p129, %p130
    %p132 = scmp.ne.s32.totalorder %s124, %s126
    %p133 = scmp.eq.s32.totalorder %s16, 15
    %p134 = por %p132, %p133
    %p135 = scmp.ne.s32.totalorder %s126, %s127
    %p136 = scmp.eq.s32.totalorder %s16, 0
    %p137 = por %p135, %p136
    %p138 = scmp.ne.s32.totalorder %s126, %s127
    %p139 = scmp.eq.s32.totalorder %s17, 15
    %p140 = por %p138, %p139
    %p142 = scmp.ne.s32.totalorder %s127, %s141
    %p143 = scmp.eq.s32.totalorder %s17, 0
    %p144 = por %p142, %p143
    %s146 = sadd.s32 %s145, 1
    %p149 = scmp.eq.s32.totalorder %s11, 15
    %p150 = scmp.ne.s32.totalorder %s145, %s147
    %p151 = scmp.eq.s32.totalorder %s11, 0
    %p152 = por %p150, %p151
    %p153 = scmp.ne.s32.totalorder %s145, %s147
    %p154 = scmp.eq.s32.totalorder %s16, 15
    %p155 = por %p153, %p154
    %p156 = scmp.ne.s32.totalorder %s147, %s148
    %p157 = scmp.eq.s32.totalorder %s16, 0
    %p158 = por %p156, %p157
    %p159 = scmp.ne.s32.totalorder %s147, %s148
    %p160 = scmp.eq.s32.totalorder %s17, 15
    %p161 = por %p159, %p160
    %p163 = scmp.ne.s32.totalorder %s148, %s162
    %p164 = scmp.eq.s32.totalorder %s17, 0
    %p165 = por %p163, %p164
    %s166 = ssub.s32 %s18, %s37
    %s167 = ssub.s32 %s19, %s33
    %s168 = sor.u32 %s166, %s167
    %p169 = scmp.eq.s32.totalorder %s168, 0
    %s171 = sadd.s32 %s170, 1
    %s172 = scalar_select %p169, %s170, %s171
    %p175 = pneg %p169
    %p176 = scmp.eq.s32.totalorder %s11, 15
    %p177 = por %p175, %p176
    %p178 = scmp.ne.s32.totalorder %s170, %s173
    %p179 = scmp.eq.s32.totalorder %s11, 0
    %p180 = por %p178, %p179
    %p181 = scmp.ne.s32.totalorder %s170, %s173
    %p182 = scmp.eq.s32.totalorder %s16, 15
    %p183 = por %p181, %p182
    %p184 = scmp.ne.s32.totalorder %s173, %s174
    %p185 = scmp.eq.s32.totalorder %s16, 0
    %p186 = por %p184, %p185
    %p187 = scmp.ne.s32.totalorder %s173, %s174
    %p188 = scmp.eq.s32.totalorder %s17, 15
    %p189 = por %p187, %p188
    %p191 = scmp.ne.s32.totalorder %s174, %s190
    %p192 = scmp.eq.s32.totalorder %s17, 0
    %p193 = por %p191, %p192
    %p194 = scmp.le.s32.totalorder 1, %s11
    %p195 = scmp.lt.s32.totalorder %s11, 17
    %p196 = pnand %p194, %p195
    %p197 = pneg %p196
    // Predicated region
    $region9: #{mha_sdpa_without_flash.3} parent=5 // pred_check
      _
    $region10: #{mha_sdpa_without_flash.3} parent=5 // pred_check_branch
      %199 = sbr.rel (%p196) target = $region12
    $region11: #{mha_sdpa_without_flash.3} parent=5 // pred_region
      %s200 = ssub.s32 %s11, 1
      // Predicated region
      $region13: #{mha_sdpa_without_flash.3} parent=11 // pred_check
        %p201 = pneg %p137
      $region14: #{mha_sdpa_without_flash.3} parent=11 // pred_check_branch
        %203 = sbr.rel (%p201) target = $region16
      $region15: #{mha_sdpa_without_flash.3} parent=11 // pred_region
        _
      $region16: #{mha_sdpa_without_flash.3} parent=11 // pred_fallthru
        _
      // Predicated region
      $region17: #{mha_sdpa_without_flash.3} parent=11 // pred_check
        %p204 = pneg %p158
      $region18: #{mha_sdpa_without_flash.3} parent=11 // pred_check_branch
        %206 = sbr.rel (%p204) target = $region20
      $region19: #{mha_sdpa_without_flash.3} parent=11 // pred_region
        _
      $region20: #{mha_sdpa_without_flash.3} parent=11 // pred_fallthru
        _
    $region12: #{mha_sdpa_without_flash.3} parent=5 // pred_fallthru
      _
    %p207 = scmp.lt.s32.totalorder %s11, 16
    // Predicated region
    $region21: #{mha_sdpa_without_flash.3} parent=5 // pred_check
      %p208 = pneg %p207
    $region22: #{mha_sdpa_without_flash.3} parent=5 // pred_check_branch
      %210 = sbr.rel (%p208) target = $region24
    $region23: #{mha_sdpa_without_flash.3} parent=5 // pred_region
      // Predicated region
      $region25: #{mha_sdpa_without_flash.3} parent=23 // pred_check
        %p211 = pneg %p54
      $region26: #{mha_sdpa_without_flash.3} parent=23 // pred_check_branch
        %213 = sbr.rel (%p211) target = $region28
      $region27: #{mha_sdpa_without_flash.3} parent=23 // pred_region
        %s214 = smul.u32 16, %s19
        %p215 = scmp.lt.s32.totalorder %s18, 1
        %s216 = scalar_select %p215, %s18, 1
        %p217 = scmp.lt.s32.totalorder %s20, 3
        %s218 = scalar_select %p217, %s20, 3
        %p219 = scmp.lt.s32.totalorder %s214, 31
        %s220 = scalar_select %p219, %s214, 31
        %s221 = smul.addr %s218, 32
        %s222 = sadd.s32 %s220, %s221
        %s223 = smul.addr %s216, 128
        %s224 = sadd.s32 %s222, %s223
        %s225 = smul.addr %s224, 4
        %s226 = scalar_lea.vmem %s0, %s225
        %s227 = smul.u32 16, %s19
      $region28: #{mha_sdpa_without_flash.3} parent=23 // pred_fallthru
        _
      // Predicated region
      $region29: #{mha_sdpa_without_flash.3} parent=23 // pred_check
        %p228 = pneg %p82
      $region30: #{mha_sdpa_without_flash.3} parent=23 // pred_check_branch
        %230 = sbr.rel (%p228) target = $region32
      $region31: #{mha_sdpa_without_flash.3} parent=23 // pred_region
        %p231 = scmp.lt.s32.totalorder %s18, 1
        %s232 = scalar_select %p231, %s18, 1
        %p233 = scmp.lt.s32.totalorder %s20, 3
        %s234 = scalar_select %p233, %s20, 3
        %s235 = smul.addr %s234, 32
        %s236 = smul.addr %s232, 128
        %s237 = sadd.s32 %s235, %s236
        %s238 = smul.addr %s237, 4
        %s239 = scalar_lea.vmem %s1, %s238
      $region32: #{mha_sdpa_without_flash.3} parent=23 // pred_fallthru
        _
      // Predicated region
      $region33: #{mha_sdpa_without_flash.3} parent=23 // pred_check
        %p240 = pneg %p110
      $region34: #{mha_sdpa_without_flash.3} parent=23 // pred_check_branch
        %242 = sbr.rel (%p240) target = $region36
      $region35: #{mha_sdpa_without_flash.3} parent=23 // pred_region
        %p243 = scmp.lt.s32.totalorder %s18, 1
        %s244 = scalar_select %p243, %s18, 1
        %p245 = scmp.lt.s32.totalorder %s20, 3
        %s246 = scalar_select %p245, %s20, 3
        %s247 = smul.addr %s246, 32
        %s248 = smul.addr %s244, 128
        %s249 = sadd.s32 %s247, %s248
        %s250 = smul.addr %s249, 4
        %s251 = scalar_lea.vmem %s2, %s250
      $region36: #{mha_sdpa_without_flash.3} parent=23 // pred_fallthru
        _
    $region24: #{mha_sdpa_without_flash.3} parent=5 // pred_fallthru
      _
    %p252 = scmp.le.s32.totalorder 1, %s11
    %p253 = scmp.lt.s32.totalorder %s11, 17
    %p254 = pnand %p252, %p253
    %p255 = pneg %p254
    // Predicated region
    $region37: #{mha_sdpa_without_flash.3} parent=5 // pred_check
      _
    $region38: #{mha_sdpa_without_flash.3} parent=5 // pred_check_branch
      %257 = sbr.rel (%p254) target = $region40
    $region39: #{mha_sdpa_without_flash.3} parent=5 // pred_region
      %s258 = ssub.s32 %s11, 1
      %s259 = smul.u32 16, %s22
      %p260 = scmp.lt.s32.totalorder %s21, 1
      %s261 = scalar_select %p260, %s21, 1
      %p262 = scmp.lt.s32.totalorder %s23, 3
      %s263 = scalar_select %p262, %s23, 3
      %p264 = scmp.lt.s32.totalorder %s259, 31
      %s265 = scalar_select %p264, %s259, 31
      %s266 = smul.addr %s263, 32
      %s267 = sadd.s32 %s265, %s266
      %s268 = smul.addr %s261, 128
      %s269 = sadd.s32 %s267, %s268
      %s270 = smul.addr %s269, 4
      %s271 = scalar_lea.vmem %s0, %s270
      %p272 = pneg %p60
      %p273 = pneg %p57
      %p274 = scmp.lt.s32.totalorder %s21, 1
      %s275 = scalar_select %p274, %s21, 1
      %p276 = scmp.lt.s32.totalorder %s23, 3
      %s277 = scalar_select %p276, %s23, 3
      %s278 = smul.addr %s277, 32
      %s279 = smul.addr %s275, 128
      %s280 = sadd.s32 %s278, %s279
      %s281 = smul.addr %s280, 4
      %s282 = scalar_lea.vmem %s1, %s281
      %p283 = pneg %p88
      %p284 = pneg %p85
      %p285 = scmp.lt.s32.totalorder %s21, 1
      %s286 = scalar_select %p285, %s21, 1
      %p287 = scmp.lt.s32.totalorder %s23, 3
      %s288 = scalar_select %p287, %s23, 3
      %s289 = smul.addr %s288, 32
      %s290 = smul.addr %s286, 128
      %s291 = sadd.s32 %s289, %s290
      %s292 = smul.addr %s291, 4
      %s293 = scalar_lea.vmem %s2, %s292
      %p294 = pneg %p116
      %p295 = pneg %p113
      %p296 = pneg %p137
      %p297 = pneg %p134
      %p298 = pneg %p158
      %p299 = pneg %p155
      %p300 = pneg %p186
      %p301 = pneg %p183
      %s302 = smul.u32 16, %s22
      %p303 = scmp.lt.s32.totalorder %s21, 1
      %s304 = scalar_select %p303, %s21, 1
      %p305 = scmp.lt.s32.totalorder %s302, 31
      %s306 = scalar_select %p305, %s302, 31
      %s307 = smul.addr %s304, 32
      %s308 = sadd.s32 %s306, %s307
      %s309 = smul.addr %s308, 8
      %s310 = scalar_lea.vmem %s5, %s309
      %s311 = smul.u32 16, %s22
      %p312 = scmp.lt.s32.totalorder %s21, 1
      %s313 = scalar_select %p312, %s21, 1
      %p314 = scmp.lt.s32.totalorder %s23, 3
      %s315 = scalar_select %p314, %s23, 3
      %p316 = scmp.lt.s32.totalorder %s311, 31
      %s317 = scalar_select %p316, %s311, 31
      %s318 = smul.addr %s315, 32
      %s319 = sadd.s32 %s317, %s318
      %s320 = smul.addr %s313, 128
      %s321 = sadd.s32 %s319, %s320
      %s322 = smul.addr %s321, 4
      %s323 = scalar_lea.vmem %s0, %s322
      %s324 = smul.u32 16, %s22
      %p325 = scmp.lt.s32.totalorder %s21, 1
      %s326 = scalar_select %p325, %s21, 1
      %p327 = scmp.lt.s32.totalorder %s23, 3
      %s328 = scalar_select %p327, %s23, 3
      %s329 = smul.addr %s328, 32
      %s330 = smul.addr %s326, 128
      %s331 = sadd.s32 %s329, %s330
      %s332 = smul.addr %s331, 4
      %s333 = scalar_lea.vmem %s1, %s332
      %p334 = scmp.lt.s32.totalorder %s21, 1
      %s335 = scalar_select %p334, %s21, 1
      %p336 = scmp.lt.s32.totalorder %s23, 3
      %s337 = scalar_select %p336, %s23, 3
      %s338 = smul.addr %s337, 32
      %s339 = smul.addr %s335, 128
      %s340 = sadd.s32 %s338, %s339
      %s341 = smul.addr %s340, 4
      %s342 = scalar_lea.vmem %s2, %s341
      %s343 = smul.u32 16, %s22
      %p344 = scmp.lt.s32.totalorder %s21, 1
      %s345 = scalar_select %p344, %s21, 1
      %p346 = scmp.lt.s32.totalorder %s343, 31
      %s347 = scalar_select %p346, %s343, 31
      %s348 = smul.addr %s345, 32
      %s349 = sadd.s32 %s347, %s348
      %s350 = smul.addr %s349, 8
      %s351 = scalar_lea.vmem %s5, %s350
      %s352 = smul.u32 16, %s22
      %s354 = smul.u32 %s22, 128
      %p355 = scmp.eq.s32.totalorder %s23, 0
      // Predicated region
      $region41: #{mha_sdpa_without_flash.3} parent=39 // pred_check
        %p356 = pneg %p355
      $region42: #{mha_sdpa_without_flash.3} parent=39 // pred_check_branch
        %358 = sbr.rel (%p356) target = $region44
      $region43: #{mha_sdpa_without_flash.3} parent=39 // pred_region
        %v359 = vlaneseq
        %v360 = vshrl.u32 %v359, 7
        %v361 = vadd.s32 %v360, 8
        %v362 = vadd.s32 %v360, 16
        %v363 = vadd.s32 %v360, 24
        %v364 = vadd.s32 %v360, 32
        %v365 = vadd.s32 %v360, 40
        %v366 = vadd.s32 %v360, 48
        %v367 = vadd.s32 %v360, 56
        %v368 = vadd.s32 %v360, 64
        %v369 = vadd.s32 %v360, 72
        %v370 = vadd.s32 %v360, 80
        %v371 = vadd.s32 %v360, 88
        %v372 = vadd.s32 %v360, 96
        %v373 = vadd.s32 %v360, 104
        %v374 = vadd.s32 %v360, 112
        %v375 = vadd.s32 %v360, 120
        %v376 = vstv %s354
        %v377 = vadd.s32 %v376, %v360
        %v378 = vadd.s32 %v376, %v361
        %v379 = vadd.s32 %v376, %v362
        %v380 = vadd.s32 %v376, %v363
        %v381 = vadd.s32 %v376, %v364
        %v382 = vadd.s32 %v376, %v365
        %v383 = vadd.s32 %v376, %v366
        %v384 = vadd.s32 %v376, %v367
        %v385 = vadd.s32 %v376, %v368
        %v386 = vadd.s32 %v376, %v369
        %v387 = vadd.s32 %v376, %v370
        %v388 = vadd.s32 %v376, %v371
        %v389 = vadd.s32 %v376, %v372
        %v390 = vadd.s32 %v376, %v373
        %v391 = vadd.s32 %v376, %v374
        %v392 = vadd.s32 %v376, %v375
        %v393 = vld [vmem:[%s4] sm:$0x1]
        %v395 = vperm.slane %v393, 0
        %vm397 = vcmp.eq.s32.totalorder %v377, 255
        %vm398 = vcmp.eq.s32.totalorder %v378, 255
        %vm399 = vcmp.eq.s32.totalorder %v379, 255
        %vm400 = vcmp.eq.s32.totalorder %v380, 255
        %vm401 = vcmp.eq.s32.totalorder %v381, 255
        %vm402 = vcmp.eq.s32.totalorder %v382, 255
        %vm403 = vcmp.eq.s32.totalorder %v383, 255
        %vm404 = vcmp.eq.s32.totalorder %v384, 255
        %vm405 = vcmp.eq.s32.totalorder %v385, 255
        %vm406 = vcmp.eq.s32.totalorder %v386, 255
        %vm407 = vcmp.eq.s32.totalorder %v387, 255
        %vm408 = vcmp.eq.s32.totalorder %v388, 255
        %vm409 = vcmp.eq.s32.totalorder %v389, 255
        %vm410 = vcmp.eq.s32.totalorder %v390, 255
        %vm411 = vcmp.eq.s32.totalorder %v391, 255
        %vm412 = vcmp.eq.s32.totalorder %v392, 255
        %v413 = vsel %vm397, nan, %v395
        %v414 = vsel %vm398, nan, %v395
        %v415 = vsel %vm399, nan, %v395
        %v416 = vsel %vm400, nan, %v395
        %v417 = vsel %vm401, nan, %v395
        %v418 = vsel %vm402, nan, %v395
        %v419 = vsel %vm403, nan, %v395
        %v420 = vsel %vm404, nan, %v395
        %v421 = vsel %vm405, nan, %v395
        %v422 = vsel %vm406, nan, %v395
        %v423 = vsel %vm407, nan, %v395
        %v424 = vsel %vm408, nan, %v395
        %v425 = vsel %vm409, nan, %v395
        %v426 = vsel %vm410, nan, %v395
        %v427 = vsel %vm411, nan, %v395
        %v428 = vsel %vm412, nan, %v395
        %vm429 = vcmask 523264
        %430 = vst.msk [vmem:[%s351] sm:$0xff] %vm429, %v413
        %431 = vst.msk [vmem:[%s351 + $0x8] sm:$0xff] %vm429, %v414
        %432 = vst.msk [vmem:[%s351 + $0x10] sm:$0xff] %vm429, %v415
        %433 = vst.msk [vmem:[%s351 + $0x18] sm:$0xff] %vm429, %v416
        %434 = vst.msk [vmem:[%s351 + $0x20] sm:$0xff] %vm429, %v417
        %435 = vst.msk [vmem:[%s351 + $0x28] sm:$0xff] %vm429, %v418
        %436 = vst.msk [vmem:[%s351 + $0x30] sm:$0xff] %vm429, %v419
        %437 = vst.msk [vmem:[%s351 + $0x38] sm:$0xff] %vm429, %v420
        %438 = vst.msk [vmem:[%s351 + $0x40] sm:$0xff] %vm429, %v421
        %439 = vst.msk [vmem:[%s351 + $0x48] sm:$0xff] %vm429, %v422
        %440 = vst.msk [vmem:[%s351 + $0x50] sm:$0xff] %vm429, %v423
        %441 = vst.msk [vmem:[%s351 + $0x58] sm:$0xff] %vm429, %v424
        %442 = vst.msk [vmem:[%s351 + $0x60] sm:$0xff] %vm429, %v425
        %443 = vst.msk [vmem:[%s351 + $0x68] sm:$0xff] %vm429, %v426
        %444 = vst.msk [vmem:[%s351 + $0x70] sm:$0xff] %vm429, %v427
        %445 = vst.msk [vmem:[%s351 + $0x78] sm:$0xff] %vm429, %v428
      $region44: #{mha_sdpa_without_flash.3} parent=39 // pred_fallthru
        _
      %v446 = vld [vmem:[%s323] sm:$0xf]
      %v447 = vld [vmem:[%s323 + $0x4] sm:$0xf]
      %v448 = vld [vmem:[%s323 + $0x8] sm:$0xf]
      %v449 = vld [vmem:[%s323 + $0xc] sm:$0xf]
      %v450 = vld [vmem:[%s323 + $0x10] sm:$0xf]
      %v451 = vld [vmem:[%s323 + $0x14] sm:$0xf]
      %v452 = vld [vmem:[%s323 + $0x18] sm:$0xf]
      %v453 = vld [vmem:[%s323 + $0x1c] sm:$0xf]
      %v454 = vld [vmem:[%s323 + $0x20] sm:$0xf]
      %v455 = vld [vmem:[%s323 + $0x24] sm:$0xf]
      %v456 = vld [vmem:[%s323 + $0x28] sm:$0xf]
      %v457 = vld [vmem:[%s323 + $0x2c] sm:$0xf]
      %v458 = vld [vmem:[%s323 + $0x30] sm:$0xf]
      %v459 = vld [vmem:[%s323 + $0x34] sm:$0xf]
      %v460 = vld [vmem:[%s323 + $0x38] sm:$0xf]
      %v461 = vld [vmem:[%s323 + $0x3c] sm:$0xf]
      %v462 = vlaneseq
      %v463 = vshrl.u32 %v462, 7
      %v464 = vadd.s32 %v463, 8
      %v465 = vadd.s32 %v463, 16
      %v466 = vadd.s32 %v463, 24
      %v467 = vadd.s32 %v463, 32
      %v468 = vadd.s32 %v463, 40
      %v469 = vadd.s32 %v463, 48
      %v470 = vadd.s32 %v463, 56
      %v471 = vadd.s32 %v463, 64
      %v472 = vadd.s32 %v463, 72
      %v473 = vadd.s32 %v463, 80
      %v474 = vadd.s32 %v463, 88
      %v475 = vadd.s32 %v463, 96
      %v476 = vadd.s32 %v463, 104
      %v477 = vadd.s32 %v463, 112
      %v478 = vadd.s32 %v463, 120
      %v479 = vstv %s354
      %v480 = vadd.s32 %v479, %v463
      %v481 = vadd.s32 %v479, %v464
      %v482 = vadd.s32 %v479, %v465
      %v483 = vadd.s32 %v479, %v466
      %v484 = vadd.s32 %v479, %v467
      %v485 = vadd.s32 %v479, %v468
      %v486 = vadd.s32 %v479, %v469
      %v487 = vadd.s32 %v479, %v470
      %v488 = vadd.s32 %v479, %v471
      %v489 = vadd.s32 %v479, %v472
      %v490 = vadd.s32 %v479, %v473
      %v491 = vadd.s32 %v479, %v474
      %v492 = vadd.s32 %v479, %v475
      %v493 = vadd.s32 %v479, %v476
      %v494 = vadd.s32 %v479, %v477
      %v495 = vadd.s32 %v479, %v478
      // While loop
      $region45: #{mha_sdpa_without_flash.3} parent=39 // loop_pre_header
        _
      $region46: #{mha_sdpa_without_flash.3} parent=39 // loop_header
        %s497 = sphi %s22, %s499
        %p498 = scmp.ge.s32.totalorder %s497, 2
        %v502 = vphi -1e+30, %v835
        %v503 = vphi -1e+30, %v836
        %v504 = vphi -1e+30, %v837
        %v505 = vphi -1e+30, %v838
        %v506 = vphi -1e+30, %v839
        %v507 = vphi -1e+30, %v840
        %v508 = vphi -1e+30, %v841
        %v509 = vphi -1e+30, %v842
        %v510 = vphi -1e+30, %v843
        %v511 = vphi -1e+30, %v844
        %v512 = vphi -1e+30, %v845
        %v513 = vphi -1e+30, %v846
        %v514 = vphi -1e+30, %v847
        %v515 = vphi -1e+30, %v848
        %v516 = vphi -1e+30, %v849
        %v517 = vphi -1e+30, %v850
        %v518 = vphi 0.0, %v995
        %v519 = vphi 0.0, %v996
        %v520 = vphi 0.0, %v997
        %v521 = vphi 0.0, %v998
        %v522 = vphi 0.0, %v999
        %v523 = vphi 0.0, %v1000
        %v524 = vphi 0.0, %v1001
        %v525 = vphi 0.0, %v1002
        %v526 = vphi 0.0, %v1003
        %v527 = vphi 0.0, %v1004
        %v528 = vphi 0.0, %v1005
        %v529 = vphi 0.0, %v1006
        %v530 = vphi 0.0, %v1007
        %v531 = vphi 0.0, %v1008
        %v532 = vphi 0.0, %v1009
        %v533 = vphi 0.0, %v1010
        %v534 = vphi 0.0, %v1132
        %v535 = vphi 0.0, %v1133
        %v536 = vphi 0.0, %v1134
        %v537 = vphi 0.0, %v1135
        %v538 = vphi 0.0, %v1136
        %v539 = vphi 0.0, %v1137
        %v540 = vphi 0.0, %v1138
        %v541 = vphi 0.0, %v1139
        %v542 = vphi 0.0, %v1140
        %v543 = vphi 0.0, %v1141
        %v544 = vphi 0.0, %v1142
        %v545 = vphi 0.0, %v1143
        %v546 = vphi 0.0, %v1144
        %v547 = vphi 0.0, %v1145
        %v548 = vphi 0.0, %v1146
        %v549 = vphi 0.0, %v1147
      $region47: #{mha_sdpa_without_flash.3} parent=39 // loop_header_branch
        %501 = sbr.rel (%p498) target = $region51
      $region48: #{mha_sdpa_without_flash.3} parent=39 // loop_body
        %s550 = smul.u32 %s497, 128
        %s551 = sshra.s32 %s550, 3
        %s552 = sand.u32 %s550, 7
        %s553 = smul.addr %s551, 4
        %s554 = scalar_lea.vmem %s333, %s553
        %v555 = vld [vmem:[%s554] sm:$0xf]
        %v556 = vld [vmem:[%s554 + $0x4] sm:$0xf]
        %v557 = vld [vmem:[%s554 + $0x8] sm:$0xf]
        %v558 = vld [vmem:[%s554 + $0xc] sm:$0xf]
        %v559 = vld [vmem:[%s554 + $0x10] sm:$0xf]
        %v560 = vld [vmem:[%s554 + $0x14] sm:$0xf]
        %v561 = vld [vmem:[%s554 + $0x18] sm:$0xf]
        %v562 = vld [vmem:[%s554 + $0x1c] sm:$0xf]
        %v563 = vld [vmem:[%s554 + $0x20] sm:$0xf]
        %v564 = vld [vmem:[%s554 + $0x24] sm:$0xf]
        %v565 = vld [vmem:[%s554 + $0x28] sm:$0xf]
        %v566 = vld [vmem:[%s554 + $0x2c] sm:$0xf]
        %v567 = vld [vmem:[%s554 + $0x30] sm:$0xf]
        %v568 = vld [vmem:[%s554 + $0x34] sm:$0xf]
        %v569 = vld [vmem:[%s554 + $0x38] sm:$0xf]
        %v570 = vld [vmem:[%s554 + $0x3c] sm:$0xf]
        %s571 = smul.addr %s551, 4
        %s572 = scalar_lea.vmem %s342, %s571
        %v573 = vld [vmem:[%s572] sm:$0xf]
        %v574 = vld [vmem:[%s572 + $0x4] sm:$0xf]
        %v575 = vld [vmem:[%s572 + $0x8] sm:$0xf]
        %v576 = vld [vmem:[%s572 + $0xc] sm:$0xf]
        %v577 = vld [vmem:[%s572 + $0x10] sm:$0xf]
        %v578 = vld [vmem:[%s572 + $0x14] sm:$0xf]
        %v579 = vld [vmem:[%s572 + $0x18] sm:$0xf]
        %v580 = vld [vmem:[%s572 + $0x1c] sm:$0xf]
        %v581 = vld [vmem:[%s572 + $0x20] sm:$0xf]
        %v582 = vld [vmem:[%s572 + $0x24] sm:$0xf]
        %v583 = vld [vmem:[%s572 + $0x28] sm:$0xf]
        %v584 = vld [vmem:[%s572 + $0x2c] sm:$0xf]
        %v585 = vld [vmem:[%s572 + $0x30] sm:$0xf]
        %v586 = vld [vmem:[%s572 + $0x34] sm:$0xf]
        %v587 = vld [vmem:[%s572 + $0x38] sm:$0xf]
        %v588 = vld [vmem:[%s572 + $0x3c] sm:$0xf]
        %v605 = vunpack.c.l.b16 %v446
        %v606 = vunpack.c.l.b16 %v447
        %v607 = vunpack.c.l.b16 %v448
        %v608 = vunpack.c.l.b16 %v449
        %v609 = vunpack.c.l.b16 %v450
        %v610 = vunpack.c.l.b16 %v451
        %v611 = vunpack.c.l.b16 %v452
        %v612 = vunpack.c.l.b16 %v453
        %v613 = vunpack.c.l.b16 %v454
        %v614 = vunpack.c.l.b16 %v455
        %v615 = vunpack.c.l.b16 %v456
        %v616 = vunpack.c.l.b16 %v457
        %v617 = vunpack.c.l.b16 %v458
        %v618 = vunpack.c.l.b16 %v459
        %v619 = vunpack.c.l.b16 %v460
        %v620 = vunpack.c.l.b16 %v461
        %v621 = vpack.c.b16 %v606, %v605
        %v622 = vpack.c.b16 %v608, %v607
        %v623 = vpack.c.b16 %v610, %v609
        %v624 = vpack.c.b16 %v612, %v611
        %v625 = vpack.c.b16 %v614, %v613
        %v626 = vpack.c.b16 %v616, %v615
        %v627 = vpack.c.b16 %v618, %v617
        %v628 = vpack.c.b16 %v620, %v619
        %v645 = vunpack.c.l.b16 %v555
        %v646 = vunpack.c.l.b16 %v556
        %v647 = vunpack.c.l.b16 %v557
        %v648 = vunpack.c.l.b16 %v558
        %v649 = vunpack.c.l.b16 %v559
        %v650 = vunpack.c.l.b16 %v560
        %v651 = vunpack.c.l.b16 %v561
        %v652 = vunpack.c.l.b16 %v562
        %v653 = vunpack.c.l.b16 %v563
        %v654 = vunpack.c.l.b16 %v564
        %v655 = vunpack.c.l.b16 %v565
        %v656 = vunpack.c.l.b16 %v566
        %v657 = vunpack.c.l.b16 %v567
        %v658 = vunpack.c.l.b16 %v568
        %v659 = vunpack.c.l.b16 %v569
        %v660 = vunpack.c.l.b16 %v570
        %v661 = vpack.c.b16 %v646, %v645
        %v662 = vpack.c.b16 %v648, %v647
        %v663 = vpack.c.b16 %v650, %v649
        %v664 = vpack.c.b16 %v652, %v651
        %v665 = vpack.c.b16 %v654, %v653
        %v666 = vpack.c.b16 %v656, %v655
        %v667 = vpack.c.b16 %v658, %v657
        %v668 = vpack.c.b16 %v660, %v659
        %vm669 = vcmask 130048
        %v671 = vsel %vm669, %v621, 0
        %v674 = vsel %vm669, %v622, 0
        %v677 = vsel %vm669, %v623, 0
        %v680 = vsel %vm669, %v624, 0
        %v683 = vsel %vm669, %v625, 0
        %v686 = vsel %vm669, %v626, 0
        %v689 = vsel %vm669, %v627, 0
        %v692 = vsel %vm669, %v628, 0
        %v695 = vsel %vm669, %v661, 0
        %v698 = vsel %vm669, %v662, 0
        %v701 = vsel %vm669, %v663, 0
        %v704 = vsel %vm669, %v664, 0
        %v707 = vsel %vm669, %v665, 0
        %v710 = vsel %vm669, %v666, 0
        %v713 = vsel %vm669, %v667, 0
        %v716 = vsel %vm669, %v668, 0
        %718 = vmatpush.bf16.xpose.msra.mxu0 %v716
        %719 = vmatpush.bf16.xpose.msra.mxu0 %v713
        %720 = vmatpush.bf16.xpose.msra.mxu0 %v710
        %721 = vmatpush.bf16.xpose.msra.mxu0 %v707
        %722 = vmatpush.bf16.xpose.msra.mxu0 %v704
        %723 = vmatpush.bf16.xpose.msra.mxu0 %v701
        %724 = vmatpush.bf16.xpose.msra.mxu0 %v698
        %725 = vmatpush.bf16.xpose.msra.mxu0 %v695
        %726 = vmatmul.bf16.gmra.mxu0 %v671
        %v727 = vpop.f32.mrf.mxu0
        %v728 = vadd.f32 0.0, %v727
        %v729 = vpop.f32.mrf.mxu0
        %v730 = vadd.f32 0.0, %v729
        %731 = vmatmul.bf16.gmra.mxu0 %v674
        %v732 = vpop.f32.mrf.mxu0
        %v733 = vadd.f32 0.0, %v732
        %v734 = vpop.f32.mrf.mxu0
        %v735 = vadd.f32 0.0, %v734
        %736 = vmatmul.bf16.gmra.mxu0 %v677
        %v737 = vpop.f32.mrf.mxu0
        %v738 = vadd.f32 0.0, %v737
        %v739 = vpop.f32.mrf.mxu0
        %v740 = vadd.f32 0.0, %v739
        %741 = vmatmul.bf16.gmra.mxu0 %v680
        %v742 = vpop.f32.mrf.mxu0
        %v743 = vadd.f32 0.0, %v742
        %v744 = vpop.f32.mrf.mxu0
        %v745 = vadd.f32 0.0, %v744
        %746 = vmatmul.bf16.gmra.mxu0 %v683
        %v747 = vpop.f32.mrf.mxu0
        %v748 = vadd.f32 0.0, %v747
        %v749 = vpop.f32.mrf.mxu0
        %v750 = vadd.f32 0.0, %v749
        %751 = vmatmul.bf16.gmra.mxu0 %v686
        %v752 = vpop.f32.mrf.mxu0
        %v753 = vadd.f32 0.0, %v752
        %v754 = vpop.f32.mrf.mxu0
        %v755 = vadd.f32 0.0, %v754
        %756 = vmatmul.bf16.gmra.mxu0 %v689
        %v757 = vpop.f32.mrf.mxu0
        %v758 = vadd.f32 0.0, %v757
        %v759 = vpop.f32.mrf.mxu0
        %v760 = vadd.f32 0.0, %v759
        %761 = vmatmul.bf16.gmra.mxu0 %v692
        %v762 = vpop.f32.mrf.mxu0
        %v763 = vadd.f32 0.0, %v762
        %v764 = vpop.f32.mrf.mxu0
        %v765 = vadd.f32 0.0, %v764
        %766 = vdwg.mxu0
        %v767 = vlaneseq
        %v768 = vand.u32 %v767, 127
        %v769 = vstv %s550
        %v770 = vadd.s32 %v769, %v768
        %vm771 = vcmp.gt.s32.totalorder %v770, %v480
        %vm772 = vcmp.gt.s32.totalorder %v770, %v481
        %vm773 = vcmp.gt.s32.totalorder %v770, %v482
        %vm774 = vcmp.gt.s32.totalorder %v770, %v483
        %vm775 = vcmp.gt.s32.totalorder %v770, %v484
        %vm776 = vcmp.gt.s32.totalorder %v770, %v485
        %vm777 = vcmp.gt.s32.totalorder %v770, %v486
        %vm778 = vcmp.gt.s32.totalorder %v770, %v487
        %vm779 = vcmp.gt.s32.totalorder %v770, %v488
        %vm780 = vcmp.gt.s32.totalorder %v770, %v489
        %vm781 = vcmp.gt.s32.totalorder %v770, %v490
        %vm782 = vcmp.gt.s32.totalorder %v770, %v491
        %vm783 = vcmp.gt.s32.totalorder %v770, %v492
        %vm784 = vcmp.gt.s32.totalorder %v770, %v493
        %vm785 = vcmp.gt.s32.totalorder %v770, %v494
        %vm786 = vcmp.gt.s32.totalorder %v770, %v495
        %v787 = vsel %vm771, %v728, -1e+30
        %v788 = vsel %vm772, %v730, -1e+30
        %v789 = vsel %vm773, %v733, -1e+30
        %v790 = vsel %vm774, %v735, -1e+30
        %v791 = vsel %vm775, %v738, -1e+30
        %v792 = vsel %vm776, %v740, -1e+30
        %v793 = vsel %vm777, %v743, -1e+30
        %v794 = vsel %vm778, %v745, -1e+30
        %v795 = vsel %vm779, %v748, -1e+30
        %v796 = vsel %vm780, %v750, -1e+30
        %v797 = vsel %vm781, %v753, -1e+30
        %v798 = vsel %vm782, %v755, -1e+30
        %v799 = vsel %vm783, %v758, -1e+30
        %v800 = vsel %vm784, %v760, -1e+30
        %v801 = vsel %vm785, %v763, -1e+30
        %v802 = vsel %vm786, %v765, -1e+30
        %803 = vmax.xlane.f32.xlu0 %v787
        %v804 = vpop.xlane.xlu0 %803
        %805 = vmax.xlane.f32.xlu0 %v788
        %v806 = vpop.xlane.xlu0 %805
        %807 = vmax.xlane.f32.xlu0 %v789
        %v808 = vpop.xlane.xlu0 %807
        %809 = vmax.xlane.f32.xlu0 %v790
        %v810 = vpop.xlane.xlu0 %809
        %811 = vmax.xlane.f32.xlu0 %v791
        %v812 = vpop.xlane.xlu0 %811
        %813 = vmax.xlane.f32.xlu0 %v792
        %v814 = vpop.xlane.xlu0 %813
        %815 = vmax.xlane.f32.xlu0 %v793
        %v816 = vpop.xlane.xlu0 %815
        %817 = vmax.xlane.f32.xlu0 %v794
        %v818 = vpop.xlane.xlu0 %817
        %819 = vmax.xlane.f32.xlu0 %v795
        %v820 = vpop.xlane.xlu0 %819
        %821 = vmax.xlane.f32.xlu0 %v796
        %v822 = vpop.xlane.xlu0 %821
        %823 = vmax.xlane.f32.xlu0 %v797
        %v824 = vpop.xlane.xlu0 %823
        %825 = vmax.xlane.f32.xlu0 %v798
        %v826 = vpop.xlane.xlu0 %825
        %827 = vmax.xlane.f32.xlu0 %v799
        %v828 = vpop.xlane.xlu0 %827
        %829 = vmax.xlane.f32.xlu0 %v800
        %v830 = vpop.xlane.xlu0 %829
        %831 = vmax.xlane.f32.xlu0 %v801
        %v832 = vpop.xlane.xlu0 %831
        %833 = vmax.xlane.f32.xlu0 %v802
        %v834 = vpop.xlane.xlu0 %833
        %v835 = vmax.f32 %v502, %v804
        %v836 = vmax.f32 %v503, %v806
        %v837 = vmax.f32 %v504, %v808
        %v838 = vmax.f32 %v505, %v810
        %v839 = vmax.f32 %v506, %v812
        %v840 = vmax.f32 %v507, %v814
        %v841 = vmax.f32 %v508, %v816
        %v842 = vmax.f32 %v509, %v818
        %v843 = vmax.f32 %v510, %v820
        %v844 = vmax.f32 %v511, %v822
        %v845 = vmax.f32 %v512, %v824
        %v846 = vmax.f32 %v513, %v826
        %v847 = vmax.f32 %v514, %v828
        %v848 = vmax.f32 %v515, %v830
        %v849 = vmax.f32 %v516, %v832
        %v850 = vmax.f32 %v517, %v834
        %v851 = vsub.f32 %v502, %v835
        %v852 = vsub.f32 %v503, %v836
        %v853 = vsub.f32 %v504, %v837
        %v854 = vsub.f32 %v505, %v838
        %v855 = vsub.f32 %v506, %v839
        %v856 = vsub.f32 %v507, %v840
        %v857 = vsub.f32 %v508, %v841
        %v858 = vsub.f32 %v509, %v842
        %v859 = vsub.f32 %v510, %v843
        %v860 = vsub.f32 %v511, %v844
        %v861 = vsub.f32 %v512, %v845
        %v862 = vsub.f32 %v513, %v846
        %v863 = vsub.f32 %v514, %v847
        %v864 = vsub.f32 %v515, %v848
        %v865 = vsub.f32 %v516, %v849
        %v866 = vsub.f32 %v517, %v850
        %v867 = vmul.f32 %v851, 1.442695
        %v868 = vpow.pop %v867
        %v869 = vmul.f32 %v852, 1.442695
        %v870 = vpow.pop %v869
        %v871 = vmul.f32 %v853, 1.442695
        %v872 = vpow.pop %v871
        %v873 = vmul.f32 %v854, 1.442695
        %v874 = vpow.pop %v873
        %v875 = vmul.f32 %v855, 1.442695
        %v876 = vpow.pop %v875
        %v877 = vmul.f32 %v856, 1.442695
        %v878 = vpow.pop %v877
        %v879 = vmul.f32 %v857, 1.442695
        %v880 = vpow.pop %v879
        %v881 = vmul.f32 %v858, 1.442695
        %v882 = vpow.pop %v881
        %v883 = vmul.f32 %v859, 1.442695
        %v884 = vpow.pop %v883
        %v885 = vmul.f32 %v860, 1.442695
        %v886 = vpow.pop %v885
        %v887 = vmul.f32 %v861, 1.442695
        %v888 = vpow.pop %v887
        %v889 = vmul.f32 %v862, 1.442695
        %v890 = vpow.pop %v889
        %v891 = vmul.f32 %v863, 1.442695
        %v892 = vpow.pop %v891
        %v893 = vmul.f32 %v864, 1.442695
        %v894 = vpow.pop %v893
        %v895 = vmul.f32 %v865, 1.442695
        %v896 = vpow.pop %v895
        %v897 = vmul.f32 %v866, 1.442695
        %v898 = vpow.pop %v897
        %v899 = vsub.f32 %v787, %v835
        %v900 = vsub.f32 %v788, %v836
        %v901 = vsub.f32 %v789, %v837
        %v902 = vsub.f32 %v790, %v838
        %v903 = vsub.f32 %v791, %v839
        %v904 = vsub.f32 %v792, %v840
        %v905 = vsub.f32 %v793, %v841
        %v906 = vsub.f32 %v794, %v842
        %v907 = vsub.f32 %v795, %v843
        %v908 = vsub.f32 %v796, %v844
        %v909 = vsub.f32 %v797, %v845
        %v910 = vsub.f32 %v798, %v846
        %v911 = vsub.f32 %v799, %v847
        %v912 = vsub.f32 %v800, %v848
        %v913 = vsub.f32 %v801, %v849
        %v914 = vsub.f32 %v802, %v850
        %v915 = vmul.f32 %v899, 1.442695
        %v916 = vpow.pop %v915
        %v917 = vmul.f32 %v900, 1.442695
        %v918 = vpow.pop %v917
        %v919 = vmul.f32 %v901, 1.442695
        %v920 = vpow.pop %v919
        %v921 = vmul.f32 %v902, 1.442695
        %v922 = vpow.pop %v921
        %v923 = vmul.f32 %v903, 1.442695
        %v924 = vpow.pop %v923
        %v925 = vmul.f32 %v904, 1.442695
        %v926 = vpow.pop %v925
        %v927 = vmul.f32 %v905, 1.442695
        %v928 = vpow.pop %v927
        %v929 = vmul.f32 %v906, 1.442695
        %v930 = vpow.pop %v929
        %v931 = vmul.f32 %v907, 1.442695
        %v932 = vpow.pop %v931
        %v933 = vmul.f32 %v908, 1.442695
        %v934 = vpow.pop %v933
        %v935 = vmul.f32 %v909, 1.442695
        %v936 = vpow.pop %v935
        %v937 = vmul.f32 %v910, 1.442695
        %v938 = vpow.pop %v937
        %v939 = vmul.f32 %v911, 1.442695
        %v940 = vpow.pop %v939
        %v941 = vmul.f32 %v912, 1.442695
        %v942 = vpow.pop %v941
        %v943 = vmul.f32 %v913, 1.442695
        %v944 = vpow.pop %v943
        %v945 = vmul.f32 %v914, 1.442695
        %v946 = vpow.pop %v945
        %v947 = vmul.f32 %v868, %v518
        %v948 = vmul.f32 %v870, %v519
        %v949 = vmul.f32 %v872, %v520
        %v950 = vmul.f32 %v874, %v521
        %v951 = vmul.f32 %v876, %v522
        %v952 = vmul.f32 %v878, %v523
        %v953 = vmul.f32 %v880, %v524
        %v954 = vmul.f32 %v882, %v525
        %v955 = vmul.f32 %v884, %v526
        %v956 = vmul.f32 %v886, %v527
        %v957 = vmul.f32 %v888, %v528
        %v958 = vmul.f32 %v890, %v529
        %v959 = vmul.f32 %v892, %v530
        %v960 = vmul.f32 %v894, %v531
        %v961 = vmul.f32 %v896, %v532
        %v962 = vmul.f32 %v898, %v533
        %963 = vadd.xlane.f32.xlu0 %v916
        %v964 = vpop.xlane.xlu0 %963
        %965 = vadd.xlane.f32.xlu0 %v918
        %v966 = vpop.xlane.xlu0 %965
        %967 = vadd.xlane.f32.xlu0 %v920
        %v968 = vpop.xlane.xlu0 %967
        %969 = vadd.xlane.f32.xlu0 %v922
        %v970 = vpop.xlane.xlu0 %969
        %971 = vadd.xlane.f32.xlu0 %v924
        %v972 = vpop.xlane.xlu0 %971
        %973 = vadd.xlane.f32.xlu0 %v926
        %v974 = vpop.xlane.xlu0 %973
        %975 = vadd.xlane.f32.xlu0 %v928
        %v976 = vpop.xlane.xlu0 %975
        %977 = vadd.xlane.f32.xlu0 %v930
        %v978 = vpop.xlane.xlu0 %977
        %979 = vadd.xlane.f32.xlu0 %v932
        %v980 = vpop.xlane.xlu0 %979
        %981 = vadd.xlane.f32.xlu0 %v934
        %v982 = vpop.xlane.xlu0 %981
        %983 = vadd.xlane.f32.xlu0 %v936
        %v984 = vpop.xlane.xlu0 %983
        %985 = vadd.xlane.f32.xlu0 %v938
        %v986 = vpop.xlane.xlu0 %985
        %987 = vadd.xlane.f32.xlu0 %v940
        %v988 = vpop.xlane.xlu0 %987
        %989 = vadd.xlane.f32.xlu0 %v942
        %v990 = vpop.xlane.xlu0 %989
        %991 = vadd.xlane.f32.xlu0 %v944
        %v992 = vpop.xlane.xlu0 %991
        %993 = vadd.xlane.f32.xlu0 %v946
        %v994 = vpop.xlane.xlu0 %993
        %v995 = vadd.f32 %v947, %v964
        %v996 = vadd.f32 %v948, %v966
        %v997 = vadd.f32 %v949, %v968
        %v998 = vadd.f32 %v950, %v970
        %v999 = vadd.f32 %v951, %v972
        %v1000 = vadd.f32 %v952, %v974
        %v1001 = vadd.f32 %v953, %v976
        %v1002 = vadd.f32 %v954, %v978
        %v1003 = vadd.f32 %v955, %v980
        %v1004 = vadd.f32 %v956, %v982
        %v1005 = vadd.f32 %v957, %v984
        %v1006 = vadd.f32 %v958, %v986
        %v1007 = vadd.f32 %v959, %v988
        %v1008 = vadd.f32 %v960, %v990
        %v1009 = vadd.f32 %v961, %v992
        %v1010 = vadd.f32 %v962, %v994
        %v1011 = vmul.f32 %v868, %v534
        %v1012 = vmul.f32 %v870, %v535
        %v1013 = vmul.f32 %v872, %v536
        %v1014 = vmul.f32 %v874, %v537
        %v1015 = vmul.f32 %v876, %v538
        %v1016 = vmul.f32 %v878, %v539
        %v1017 = vmul.f32 %v880, %v540
        %v1018 = vmul.f32 %v882, %v541
        %v1019 = vmul.f32 %v884, %v542
        %v1020 = vmul.f32 %v886, %v543
        %v1021 = vmul.f32 %v888, %v544
        %v1022 = vmul.f32 %v890, %v545
        %v1023 = vmul.f32 %v892, %v546
        %v1024 = vmul.f32 %v894, %v547
        %v1025 = vmul.f32 %v896, %v548
        %v1026 = vmul.f32 %v898, %v549
        %v1027 = vpack.c.bf16 %v918, %v916
        %v1028 = vpack.c.bf16 %v922, %v920
        %v1029 = vpack.c.bf16 %v926, %v924
        %v1030 = vpack.c.bf16 %v930, %v928
        %v1031 = vpack.c.bf16 %v934, %v932
        %v1032 = vpack.c.bf16 %v938, %v936
        %v1033 = vpack.c.bf16 %v942, %v940
        %v1034 = vpack.c.bf16 %v946, %v944
        %v1051 = vunpack.c.l.b16 %v573
        %v1052 = vunpack.c.l.b16 %v574
        %v1053 = vunpack.c.l.b16 %v575
        %v1054 = vunpack.c.l.b16 %v576
        %v1055 = vunpack.c.l.b16 %v577
        %v1056 = vunpack.c.l.b16 %v578
        %v1057 = vunpack.c.l.b16 %v579
        %v1058 = vunpack.c.l.b16 %v580
        %v1059 = vunpack.c.l.b16 %v581
        %v1060 = vunpack.c.l.b16 %v582
        %v1061 = vunpack.c.l.b16 %v583
        %v1062 = vunpack.c.l.b16 %v584
        %v1063 = vunpack.c.l.b16 %v585
        %v1064 = vunpack.c.l.b16 %v586
        %v1065 = vunpack.c.l.b16 %v587
        %v1066 = vunpack.c.l.b16 %v588
        %v1067 = vpack.c.b16 %v1052, %v1051
        %v1068 = vpack.c.b16 %v1054, %v1053
        %v1069 = vpack.c.b16 %v1056, %v1055
        %v1070 = vpack.c.b16 %v1058, %v1057
        %v1071 = vpack.c.b16 %v1060, %v1059
        %v1072 = vpack.c.b16 %v1062, %v1061
        %v1073 = vpack.c.b16 %v1064, %v1063
        %v1074 = vpack.c.b16 %v1066, %v1065
        %1083 = vmatpush.bf16.msra.mxu0 %v1074
        %1084 = vmatpush.bf16.msra.mxu0 %v1073
        %1085 = vmatpush.bf16.msra.mxu0 %v1072
        %1086 = vmatpush.bf16.msra.mxu0 %v1071
        %1087 = vmatpush.bf16.msra.mxu0 %v1070
        %1088 = vmatpush.bf16.msra.mxu0 %v1069
        %1089 = vmatpush.bf16.msra.mxu0 %v1068
        %1090 = vmatpush.bf16.msra.mxu0 %v1067
        %1091 = vmatmul.bf16.gmra.mxu0 %v1027
        %v1092 = vpop.f32.mrf.mxu0
        %v1093 = vadd.f32 0.0, %v1092
        %v1094 = vpop.f32.mrf.mxu0
        %v1095 = vadd.f32 0.0, %v1094
        %1096 = vmatmul.bf16.gmra.mxu0 %v1028
        %v1097 = vpop.f32.mrf.mxu0
        %v1098 = vadd.f32 0.0, %v1097
        %v1099 = vpop.f32.mrf.mxu0
        %v1100 = vadd.f32 0.0, %v1099
        %1101 = vmatmul.bf16.gmra.mxu0 %v1029
        %v1102 = vpop.f32.mrf.mxu0
        %v1103 = vadd.f32 0.0, %v1102
        %v1104 = vpop.f32.mrf.mxu0
        %v1105 = vadd.f32 0.0, %v1104
        %1106 = vmatmul.bf16.gmra.mxu0 %v1030
        %v1107 = vpop.f32.mrf.mxu0
        %v1108 = vadd.f32 0.0, %v1107
        %v1109 = vpop.f32.mrf.mxu0
        %v1110 = vadd.f32 0.0, %v1109
        %1111 = vmatmul.bf16.gmra.mxu0 %v1031
        %v1112 = vpop.f32.mrf.mxu0
        %v1113 = vadd.f32 0.0, %v1112
        %v1114 = vpop.f32.mrf.mxu0
        %v1115 = vadd.f32 0.0, %v1114
        %1116 = vmatmul.bf16.gmra.mxu0 %v1032
        %v1117 = vpop.f32.mrf.mxu0
        %v1118 = vadd.f32 0.0, %v1117
        %v1119 = vpop.f32.mrf.mxu0
        %v1120 = vadd.f32 0.0, %v1119
        %1121 = vmatmul.bf16.gmra.mxu0 %v1033
        %v1122 = vpop.f32.mrf.mxu0
        %v1123 = vadd.f32 0.0, %v1122
        %v1124 = vpop.f32.mrf.mxu0
        %v1125 = vadd.f32 0.0, %v1124
        %1126 = vmatmul.bf16.gmra.mxu0 %v1034
        %v1127 = vpop.f32.mrf.mxu0
        %v1128 = vadd.f32 0.0, %v1127
        %v1129 = vpop.f32.mrf.mxu0
        %v1130 = vadd.f32 0.0, %v1129
        %1131 = vdwg.mxu0
        %v1132 = vadd.f32 %v1011, %v1093
        %v1133 = vadd.f32 %v1012, %v1095
        %v1134 = vadd.f32 %v1013, %v1098
        %v1135 = vadd.f32 %v1014, %v1100
        %v1136 = vadd.f32 %v1015, %v1103
        %v1137 = vadd.f32 %v1016, %v1105
        %v1138 = vadd.f32 %v1017, %v1108
        %v1139 = vadd.f32 %v1018, %v1110
        %v1140 = vadd.f32 %v1019, %v1113
        %v1141 = vadd.f32 %v1020, %v1115
        %v1142 = vadd.f32 %v1021, %v1118
        %v1143 = vadd.f32 %v1022, %v1120
        %v1144 = vadd.f32 %v1023, %v1123
        %v1145 = vadd.f32 %v1024, %v1125
        %v1146 = vadd.f32 %v1025, %v1128
        %v1147 = vadd.f32 %v1026, %v1130
      $region49: #{mha_sdpa_without_flash.3} parent=39 // loop_footer
        %s499 = sadd.s32 %s497, 1
      $region50: #{mha_sdpa_without_flash.3} parent=39 // loop_footer_branch
        %496 = sbr.rel target = $region46
      $region51: #{mha_sdpa_without_flash.3} parent=39 // loop_exit
        _
      %v1148 = vrcp.pop %v518
      %v1149 = vmul.f32 %v518, %v1148
      %v1150 = vsub.f32 1.0, %v1149
      %v1151 = vmul.f32 %v1148, %v1150
      %v1152 = vadd.f32 %v1148, %v1151
      %vm1153 = vweird.f32 %v518
      %vm1154 = vweird.f32 %v1148
      %vm1155 = vmor %vm1153, %vm1154
      %v1156 = vsel %vm1155, %v1148, %v1152
      %v1157 = vand.u32 2147483647, %v518
      %vm1158 = vcmp.eq.f32.partialorder %v1157, 8.507059e+37
      %v1159 = vand.u32 %v518, 2147483648
      %v1160 = vor.u32 1.1754944e-38, %v1159
      %v1161 = vsel %vm1158, %v1160, %v1156
      %v1162 = vmul.f32 1.0, %v1161
      %v1163 = vrcp.pop %v519
      %v1164 = vmul.f32 %v519, %v1163
      %v1165 = vsub.f32 1.0, %v1164
      %v1166 = vmul.f32 %v1163, %v1165
      %v1167 = vadd.f32 %v1163, %v1166
      %vm1168 = vweird.f32 %v519
      %vm1169 = vweird.f32 %v1163
      %vm1170 = vmor %vm1168, %vm1169
      %v1171 = vsel %vm1170, %v1163, %v1167
      %v1172 = vand.u32 2147483647, %v519
      %vm1173 = vcmp.eq.f32.partialorder %v1172, 8.507059e+37
      %v1174 = vand.u32 %v519, 2147483648
      %v1175 = vor.u32 1.1754944e-38, %v1174
      %v1176 = vsel %vm1173, %v1175, %v1171
      %v1177 = vmul.f32 1.0, %v1176
      %v1178 = vrcp.pop %v520
      %v1179 = vmul.f32 %v520, %v1178
      %v1180 = vsub.f32 1.0, %v1179
      %v1181 = vmul.f32 %v1178, %v1180
      %v1182 = vadd.f32 %v1178, %v1181
      %vm1183 = vweird.f32 %v520
      %vm1184 = vweird.f32 %v1178
      %vm1185 = vmor %vm1183, %vm1184
      %v1186 = vsel %vm1185, %v1178, %v1182
      %v1187 = vand.u32 2147483647, %v520
      %vm1188 = vcmp.eq.f32.partialorder %v1187, 8.507059e+37
      %v1189 = vand.u32 %v520, 2147483648
      %v1190 = vor.u32 1.1754944e-38, %v1189
      %v1191 = vsel %vm1188, %v1190, %v1186
      %v1192 = vmul.f32 1.0, %v1191
      %v1193 = vrcp.pop %v521
      %v1194 = vmul.f32 %v521, %v1193
      %v1195 = vsub.f32 1.0, %v1194
      %v1196 = vmul.f32 %v1193, %v1195
      %v1197 = vadd.f32 %v1193, %v1196
      %vm1198 = vweird.f32 %v521
      %vm1199 = vweird.f32 %v1193
      %vm1200 = vmor %vm1198, %vm1199
      %v1201 = vsel %vm1200, %v1193, %v1197
      %v1202 = vand.u32 2147483647, %v521
      %vm1203 = vcmp.eq.f32.partialorder %v1202, 8.507059e+37
      %v1204 = vand.u32 %v521, 2147483648
      %v1205 = vor.u32 1.1754944e-38, %v1204
      %v1206 = vsel %vm1203, %v1205, %v1201
      %v1207 = vmul.f32 1.0, %v1206
      %v1208 = vrcp.pop %v522
      %v1209 = vmul.f32 %v522, %v1208
      %v1210 = vsub.f32 1.0, %v1209
      %v1211 = vmul.f32 %v1208, %v1210
      %v1212 = vadd.f32 %v1208, %v1211
      %vm1213 = vweird.f32 %v522
      %vm1214 = vweird.f32 %v1208
      %vm1215 = vmor %vm1213, %vm1214
      %v1216 = vsel %vm1215, %v1208, %v1212
      %v1217 = vand.u32 2147483647, %v522
      %vm1218 = vcmp.eq.f32.partialorder %v1217, 8.507059e+37
      %v1219 = vand.u32 %v522, 2147483648
      %v1220 = vor.u32 1.1754944e-38, %v1219
      %v1221 = vsel %vm1218, %v1220, %v1216
      %v1222 = vmul.f32 1.0, %v1221
      %v1223 = vrcp.pop %v523
      %v1224 = vmul.f32 %v523, %v1223
      %v1225 = vsub.f32 1.0, %v1224
      %v1226 = vmul.f32 %v1223, %v1225
      %v1227 = vadd.f32 %v1223, %v1226
      %vm1228 = vweird.f32 %v523
      %vm1229 = vweird.f32 %v1223
      %vm1230 = vmor %vm1228, %vm1229
      %v1231 = vsel %vm1230, %v1223, %v1227
      %v1232 = vand.u32 2147483647, %v523
      %vm1233 = vcmp.eq.f32.partialorder %v1232, 8.507059e+37
      %v1234 = vand.u32 %v523, 2147483648
      %v1235 = vor.u32 1.1754944e-38, %v1234
      %v1236 = vsel %vm1233, %v1235, %v1231
      %v1237 = vmul.f32 1.0, %v1236
      %v1238 = vrcp.pop %v524
      %v1239 = vmul.f32 %v524, %v1238
      %v1240 = vsub.f32 1.0, %v1239
      %v1241 = vmul.f32 %v1238, %v1240
      %v1242 = vadd.f32 %v1238, %v1241
      %vm1243 = vweird.f32 %v524
      %vm1244 = vweird.f32 %v1238
      %vm1245 = vmor %vm1243, %vm1244
      %v1246 = vsel %vm1245, %v1238, %v1242
      %v1247 = vand.u32 2147483647, %v524
      %vm1248 = vcmp.eq.f32.partialorder %v1247, 8.507059e+37
      %v1249 = vand.u32 %v524, 2147483648
      %v1250 = vor.u32 1.1754944e-38, %v1249
      %v1251 = vsel %vm1248, %v1250, %v1246
      %v1252 = vmul.f32 1.0, %v1251
      %v1253 = vrcp.pop %v525
      %v1254 = vmul.f32 %v525, %v1253
      %v1255 = vsub.f32 1.0, %v1254
      %v1256 = vmul.f32 %v1253, %v1255
      %v1257 = vadd.f32 %v1253, %v1256
      %vm1258 = vweird.f32 %v525
      %vm1259 = vweird.f32 %v1253
      %vm1260 = vmor %vm1258, %vm1259
      %v1261 = vsel %vm1260, %v1253, %v1257
      %v1262 = vand.u32 2147483647, %v525
      %vm1263 = vcmp.eq.f32.partialorder %v1262, 8.507059e+37
      %v1264 = vand.u32 %v525, 2147483648
      %v1265 = vor.u32 1.1754944e-38, %v1264
      %v1266 = vsel %vm1263, %v1265, %v1261
      %v1267 = vmul.f32 1.0, %v1266
      %v1268 = vrcp.pop %v526
      %v1269 = vmul.f32 %v526, %v1268
      %v1270 = vsub.f32 1.0, %v1269
      %v1271 = vmul.f32 %v1268, %v1270
      %v1272 = vadd.f32 %v1268, %v1271
      %vm1273 = vweird.f32 %v526
      %vm1274 = vweird.f32 %v1268
      %vm1275 = vmor %vm1273, %vm1274
      %v1276 = vsel %vm1275, %v1268, %v1272
      %v1277 = vand.u32 2147483647, %v526
      %vm1278 = vcmp.eq.f32.partialorder %v1277, 8.507059e+37
      %v1279 = vand.u32 %v526, 2147483648
      %v1280 = vor.u32 1.1754944e-38, %v1279
      %v1281 = vsel %vm1278, %v1280, %v1276
      %v1282 = vmul.f32 1.0, %v1281
      %v1283 = vrcp.pop %v527
      %v1284 = vmul.f32 %v527, %v1283
      %v1285 = vsub.f32 1.0, %v1284
      %v1286 = vmul.f32 %v1283, %v1285
      %v1287 = vadd.f32 %v1283, %v1286
      %vm1288 = vweird.f32 %v527
      %vm1289 = vweird.f32 %v1283
      %vm1290 = vmor %vm1288, %vm1289
      %v1291 = vsel %vm1290, %v1283, %v1287
      %v1292 = vand.u32 2147483647, %v527
      %vm1293 = vcmp.eq.f32.partialorder %v1292, 8.507059e+37
      %v1294 = vand.u32 %v527, 2147483648
      %v1295 = vor.u32 1.1754944e-38, %v1294
      %v1296 = vsel %vm1293, %v1295, %v1291
      %v1297 = vmul.f32 1.0, %v1296
      %v1298 = vrcp.pop %v528
      %v1299 = vmul.f32 %v528, %v1298
      %v1300 = vsub.f32 1.0, %v1299
      %v1301 = vmul.f32 %v1298, %v1300
      %v1302 = vadd.f32 %v1298, %v1301
      %vm1303 = vweird.f32 %v528
      %vm1304 = vweird.f32 %v1298
      %vm1305 = vmor %vm1303, %vm1304
      %v1306 = vsel %vm1305, %v1298, %v1302
      %v1307 = vand.u32 2147483647, %v528
      %vm1308 = vcmp.eq.f32.partialorder %v1307, 8.507059e+37
      %v1309 = vand.u32 %v528, 2147483648
      %v1310 = vor.u32 1.1754944e-38, %v1309
      %v1311 = vsel %vm1308, %v1310, %v1306
      %v1312 = vmul.f32 1.0, %v1311
      %v1313 = vrcp.pop %v529
      %v1314 = vmul.f32 %v529, %v1313
      %v1315 = vsub.f32 1.0, %v1314
      %v1316 = vmul.f32 %v1313, %v1315
      %v1317 = vadd.f32 %v1313, %v1316
      %vm1318 = vweird.f32 %v529
      %vm1319 = vweird.f32 %v1313
      %vm1320 = vmor %vm1318, %vm1319
      %v1321 = vsel %vm1320, %v1313, %v1317
      %v1322 = vand.u32 2147483647, %v529
      %vm1323 = vcmp.eq.f32.partialorder %v1322, 8.507059e+37
      %v1324 = vand.u32 %v529, 2147483648
      %v1325 = vor.u32 1.1754944e-38, %v1324
      %v1326 = vsel %vm1323, %v1325, %v1321
      %v1327 = vmul.f32 1.0, %v1326
      %v1328 = vrcp.pop %v530
      %v1329 = vmul.f32 %v530, %v1328
      %v1330 = vsub.f32 1.0, %v1329
      %v1331 = vmul.f32 %v1328, %v1330
      %v1332 = vadd.f32 %v1328, %v1331
      %vm1333 = vweird.f32 %v530
      %vm1334 = vweird.f32 %v1328
      %vm1335 = vmor %vm1333, %vm1334
      %v1336 = vsel %vm1335, %v1328, %v1332
      %v1337 = vand.u32 2147483647, %v530
      %vm1338 = vcmp.eq.f32.partialorder %v1337, 8.507059e+37
      %v1339 = vand.u32 %v530, 2147483648
      %v1340 = vor.u32 1.1754944e-38, %v1339
      %v1341 = vsel %vm1338, %v1340, %v1336
      %v1342 = vmul.f32 1.0, %v1341
      %v1343 = vrcp.pop %v531
      %v1344 = vmul.f32 %v531, %v1343
      %v1345 = vsub.f32 1.0, %v1344
      %v1346 = vmul.f32 %v1343, %v1345
      %v1347 = vadd.f32 %v1343, %v1346
      %vm1348 = vweird.f32 %v531
      %vm1349 = vweird.f32 %v1343
      %vm1350 = vmor %vm1348, %vm1349
      %v1351 = vsel %vm1350, %v1343, %v1347
      %v1352 = vand.u32 2147483647, %v531
      %vm1353 = vcmp.eq.f32.partialorder %v1352, 8.507059e+37
      %v1354 = vand.u32 %v531, 2147483648
      %v1355 = vor.u32 1.1754944e-38, %v1354
      %v1356 = vsel %vm1353, %v1355, %v1351
      %v1357 = vmul.f32 1.0, %v1356
      %v1358 = vrcp.pop %v532
      %v1359 = vmul.f32 %v532, %v1358
      %v1360 = vsub.f32 1.0, %v1359
      %v1361 = vmul.f32 %v1358, %v1360
      %v1362 = vadd.f32 %v1358, %v1361
      %vm1363 = vweird.f32 %v532
      %vm1364 = vweird.f32 %v1358
      %vm1365 = vmor %vm1363, %vm1364
      %v1366 = vsel %vm1365, %v1358, %v1362
      %v1367 = vand.u32 2147483647, %v532
      %vm1368 = vcmp.eq.f32.partialorder %v1367, 8.507059e+37
      %v1369 = vand.u32 %v532, 2147483648
      %v1370 = vor.u32 1.1754944e-38, %v1369
      %v1371 = vsel %vm1368, %v1370, %v1366
      %v1372 = vmul.f32 1.0, %v1371
      %v1373 = vrcp.pop %v533
      %v1374 = vmul.f32 %v533, %v1373
      %v1375 = vsub.f32 1.0, %v1374
      %v1376 = vmul.f32 %v1373, %v1375
      %v1377 = vadd.f32 %v1373, %v1376
      %vm1378 = vweird.f32 %v533
      %vm1379 = vweird.f32 %v1373
      %vm1380 = vmor %vm1378, %vm1379
      %v1381 = vsel %vm1380, %v1373, %v1377
      %v1382 = vand.u32 2147483647, %v533
      %vm1383 = vcmp.eq.f32.partialorder %v1382, 8.507059e+37
      %v1384 = vand.u32 %v533, 2147483648
      %v1385 = vor.u32 1.1754944e-38, %v1384
      %v1386 = vsel %vm1383, %v1385, %v1381
      %v1387 = vmul.f32 1.0, %v1386
      %v1388 = vmul.f32 %v534, %v1162
      %v1389 = vmul.f32 %v535, %v1177
      %v1390 = vmul.f32 %v536, %v1192
      %v1391 = vmul.f32 %v537, %v1207
      %v1392 = vmul.f32 %v538, %v1222
      %v1393 = vmul.f32 %v539, %v1237
      %v1394 = vmul.f32 %v540, %v1252
      %v1395 = vmul.f32 %v541, %v1267
      %v1396 = vmul.f32 %v542, %v1282
      %v1397 = vmul.f32 %v543, %v1297
      %v1398 = vmul.f32 %v544, %v1312
      %v1399 = vmul.f32 %v545, %v1327
      %v1400 = vmul.f32 %v546, %v1342
      %v1401 = vmul.f32 %v547, %v1357
      %v1402 = vmul.f32 %v548, %v1372
      %v1403 = vmul.f32 %v549, %v1387
      %v1404 = vpack.c.bf16 %v1389, %v1388
      %v1405 = vpack.c.bf16 %v1391, %v1390
      %v1406 = vpack.c.bf16 %v1393, %v1392
      %v1407 = vpack.c.bf16 %v1395, %v1394
      %v1408 = vpack.c.bf16 %v1397, %v1396
      %v1409 = vpack.c.bf16 %v1399, %v1398
      %v1410 = vpack.c.bf16 %v1401, %v1400
      %v1411 = vpack.c.bf16 %v1403, %v1402
      %v1412 = vld [vmem:[%s351] sm:$0xff]
      %v1413 = vld [vmem:[%s351 + $0x8] sm:$0xff]
      %v1414 = vld [vmem:[%s351 + $0x10] sm:$0xff]
      %v1415 = vld [vmem:[%s351 + $0x18] sm:$0xff]
      %v1416 = vld [vmem:[%s351 + $0x20] sm:$0xff]
      %v1417 = vld [vmem:[%s351 + $0x28] sm:$0xff]
      %v1418 = vld [vmem:[%s351 + $0x30] sm:$0xff]
      %v1419 = vld [vmem:[%s351 + $0x38] sm:$0xff]
      %v1420 = vld [vmem:[%s351 + $0x40] sm:$0xff]
      %v1421 = vld [vmem:[%s351 + $0x48] sm:$0xff]
      %v1422 = vld [vmem:[%s351 + $0x50] sm:$0xff]
      %v1423 = vld [vmem:[%s351 + $0x58] sm:$0xff]
      %v1424 = vld [vmem:[%s351 + $0x60] sm:$0xff]
      %v1425 = vld [vmem:[%s351 + $0x68] sm:$0xff]
      %v1426 = vld [vmem:[%s351 + $0x70] sm:$0xff]
      %v1427 = vld [vmem:[%s351 + $0x78] sm:$0xff]
      %s1428 = smul.u32 %s23, 2
      %s1429 = smul.addr %s1428, 4
      %s1430 = scalar_lea.vmem %s3, %s1429
      %v1431 = vld [vmem:[%s1430] sm:$0xf]
      %v1432 = vld [vmem:[%s1430 + $0x4] sm:$0xf]
      %v1435 = vunpack.c.l.b16 %v1431
      %v1436 = vunpack.c.l.b16 %v1432
      %v1437 = vpack.c.b16 %v1436, %v1435
      %vm1439 = vcmask 130048
      %v1441 = vsel %vm1439, %v1404, 0
      %v1444 = vsel %vm1439, %v1405, 0
      %v1447 = vsel %vm1439, %v1406, 0
      %v1450 = vsel %vm1439, %v1407, 0
      %v1453 = vsel %vm1439, %v1408, 0
      %v1456 = vsel %vm1439, %v1409, 0
      %v1459 = vsel %vm1439, %v1410, 0
      %v1462 = vsel %vm1439, %v1411, 0
      %1464 = vmatpush.bf16.msra.mxu0 0
      %1465 = vmatpush.bf16.msra.mxu0 0
      %1466 = vmatpush.bf16.msra.mxu0 0
      %1467 = vmatpush.bf16.msra.mxu0 0
      %1468 = vmatpush.bf16.msra.mxu0 0
      %1469 = vmatpush.bf16.msra.mxu0 0
      %1470 = vmatpush.bf16.msra.mxu0 0
      %1471 = vmatpush.bf16.msra.mxu0 %v1437
      %1472 = vmatmul.bf16.gmra.mxu0 %v1441
      %v1473 = vpop.f32.mrf.mxu0
      %v1474 = vadd.f32 0.0, %v1473
      %v1475 = vpop.f32.mrf.mxu0
      %v1476 = vadd.f32 0.0, %v1475
      %1477 = vmatmul.bf16.gmra.mxu0 %v1444
      %v1478 = vpop.f32.mrf.mxu0
      %v1479 = vadd.f32 0.0, %v1478
      %v1480 = vpop.f32.mrf.mxu0
      %v1481 = vadd.f32 0.0, %v1480
      %1482 = vmatmul.bf16.gmra.mxu0 %v1447
      %v1483 = vpop.f32.mrf.mxu0
      %v1484 = vadd.f32 0.0, %v1483
      %v1485 = vpop.f32.mrf.mxu0
      %v1486 = vadd.f32 0.0, %v1485
      %1487 = vmatmul.bf16.gmra.mxu0 %v1450
      %v1488 = vpop.f32.mrf.mxu0
      %v1489 = vadd.f32 0.0, %v1488
      %v1490 = vpop.f32.mrf.mxu0
      %v1491 = vadd.f32 0.0, %v1490
      %1492 = vmatmul.bf16.gmra.mxu0 %v1453
      %v1493 = vpop.f32.mrf.mxu0
      %v1494 = vadd.f32 0.0, %v1493
      %v1495 = vpop.f32.mrf.mxu0
      %v1496 = vadd.f32 0.0, %v1495
      %1497 = vmatmul.bf16.gmra.mxu0 %v1456
      %v1498 = vpop.f32.mrf.mxu0
      %v1499 = vadd.f32 0.0, %v1498
      %v1500 = vpop.f32.mrf.mxu0
      %v1501 = vadd.f32 0.0, %v1500
      %1502 = vmatmul.bf16.gmra.mxu0 %v1459
      %v1503 = vpop.f32.mrf.mxu0
      %v1504 = vadd.f32 0.0, %v1503
      %v1505 = vpop.f32.mrf.mxu0
      %v1506 = vadd.f32 0.0, %v1505
      %1507 = vmatmul.bf16.gmra.mxu0 %v1462
      %v1508 = vpop.f32.mrf.mxu0
      %v1509 = vadd.f32 0.0, %v1508
      %v1510 = vpop.f32.mrf.mxu0
      %v1511 = vadd.f32 0.0, %v1510
      %1512 = vdwg.mxu0
      %v1513 = vadd.f32 %v1412, %v1474
      %v1514 = vadd.f32 %v1413, %v1476
      %v1515 = vadd.f32 %v1414, %v1479
      %v1516 = vadd.f32 %v1415, %v1481
      %v1517 = vadd.f32 %v1416, %v1484
      %v1518 = vadd.f32 %v1417, %v1486
      %v1519 = vadd.f32 %v1418, %v1489
      %v1520 = vadd.f32 %v1419, %v1491
      %v1521 = vadd.f32 %v1420, %v1494
      %v1522 = vadd.f32 %v1421, %v1496
      %v1523 = vadd.f32 %v1422, %v1499
      %v1524 = vadd.f32 %v1423, %v1501
      %v1525 = vadd.f32 %v1424, %v1504
      %v1526 = vadd.f32 %v1425, %v1506
      %v1527 = vadd.f32 %v1426, %v1509
      %v1528 = vadd.f32 %v1427, %v1511
      %vm1529 = vcmask 523264
      %1530 = vst.msk [vmem:[%s351] sm:$0xff] %vm1529, %v1513
      %1531 = vst.msk [vmem:[%s351 + $0x8] sm:$0xff] %vm1529, %v1514
      %1532 = vst.msk [vmem:[%s351 + $0x10] sm:$0xff] %vm1529, %v1515
      %1533 = vst.msk [vmem:[%s351 + $0x18] sm:$0xff] %vm1529, %v1516
      %1534 = vst.msk [vmem:[%s351 + $0x20] sm:$0xff] %vm1529, %v1517
      %1535 = vst.msk [vmem:[%s351 + $0x28] sm:$0xff] %vm1529, %v1518
      %1536 = vst.msk [vmem:[%s351 + $0x30] sm:$0xff] %vm1529, %v1519
      %1537 = vst.msk [vmem:[%s351 + $0x38] sm:$0xff] %vm1529, %v1520
      %1538 = vst.msk [vmem:[%s351 + $0x40] sm:$0xff] %vm1529, %v1521
      %1539 = vst.msk [vmem:[%s351 + $0x48] sm:$0xff] %vm1529, %v1522
      %1540 = vst.msk [vmem:[%s351 + $0x50] sm:$0xff] %vm1529, %v1523
      %1541 = vst.msk [vmem:[%s351 + $0x58] sm:$0xff] %vm1529, %v1524
      %1542 = vst.msk [vmem:[%s351 + $0x60] sm:$0xff] %vm1529, %v1525
      %1543 = vst.msk [vmem:[%s351 + $0x68] sm:$0xff] %vm1529, %v1526
      %1544 = vst.msk [vmem:[%s351 + $0x70] sm:$0xff] %vm1529, %v1527
      %1545 = vst.msk [vmem:[%s351 + $0x78] sm:$0xff] %vm1529, %v1528
      %s1546 = smul.u32 16, %s22
      %p1547 = scmp.lt.s32.totalorder %s21, 1
      %s1548 = scalar_select %p1547, %s21, 1
      %p1549 = scmp.lt.s32.totalorder %s1546, 31
      %s1550 = scalar_select %p1549, %s1546, 31
      %s1551 = smul.addr %s1548, 32
      %s1552 = sadd.s32 %s1550, %s1551
      %s1553 = smul.addr %s1552, 8
      %s1554 = scalar_lea.vmem %s5, %s1553
      // Predicated region
      $region52: #{mha_sdpa_without_flash.3} parent=39 // pred_check
        %p1555 = pneg %p183
      $region53: #{mha_sdpa_without_flash.3} parent=39 // pred_check_branch
        %1557 = sbr.rel (%p1555) target = $region55
      $region54: #{mha_sdpa_without_flash.3} parent=39 // pred_region
        %s1558 = smul.u32 16, %s22
      $region55: #{mha_sdpa_without_flash.3} parent=39 // pred_fallthru
        _
    $region40: #{mha_sdpa_without_flash.3} parent=5 // pred_fallthru
      _
    %p1559 = scmp.le.s32.totalorder 2, %s11
    // Predicated region
    $region56: #{mha_sdpa_without_flash.3} parent=5 // pred_check
      %p1560 = pneg %p1559
    $region57: #{mha_sdpa_without_flash.3} parent=5 // pred_check_branch
      %1562 = sbr.rel (%p1560) target = $region59
    $region58: #{mha_sdpa_without_flash.3} parent=5 // pred_region
      %s1563 = ssub.s32 %s11, 2
      // Predicated region
      $region60: #{mha_sdpa_without_flash.3} parent=58 // pred_check
        %p1564 = pneg %p189
      $region61: #{mha_sdpa_without_flash.3} parent=58 // pred_check_branch
        %1566 = sbr.rel (%p1564) target = $region63
      $region62: #{mha_sdpa_without_flash.3} parent=58 // pred_region
        %s1567 = smul.u32 16, %s25
        %p1568 = scmp.lt.s32.totalorder %s24, 1
        %s1569 = scalar_select %p1568, %s24, 1
        %p1570 = scmp.lt.s32.totalorder %s1567, 31
        %s1571 = scalar_select %p1570, %s1567, 31
        %s1572 = smul.addr %s1569, 32
        %s1573 = sadd.s32 %s1571, %s1572
        %s1574 = smul.addr %s1573, 8
        %s1575 = scalar_lea.vmem %s5, %s1574
      $region63: #{mha_sdpa_without_flash.3} parent=58 // pred_fallthru
        _
    $region59: #{mha_sdpa_without_flash.3} parent=5 // pred_fallthru
      _
  $region6: #{mha_sdpa_without_flash.3} parent=0 // loop_footer
    %s15 = sadd.s32 1, %s11
  $region7: #{mha_sdpa_without_flash.3} parent=0 // loop_footer_branch
    %10 = sbr.rel target = $region3
  $region8: #{mha_sdpa_without_flash.3} parent=0 // loop_exit
    _

</llo_original>
